<compile_context>
chip_gen: v7x
topology: tpu7x:2x2x1
jax: 0.10.0
libtpu: 0.0.40
codegen_flags: <defaults>
</compile_context>

<pallas_src>
import functools
import math

import numpy as np
import jax
import jax.numpy as jnp
from jax.experimental import pallas as pl
from jax.experimental.pallas import tpu as pltpu

EPS = 1e-12


def _round_up(v, m):
    return ((v + m - 1) // m) * m


def _pointwise_soft_mask_kernel(x_ref, xn_ref, *rest, similarity, same_inputs,
                                eps, m_valid):
    """Computes one (TN, M_pad) output row-tile; x_n^T stays VMEM-resident."""
    if similarity == 'l2':
        xn2_ref, w_ref, b_ref, out_ref = rest
    else:
        w_ref, b_ref, out_ref = rest

    f32 = jnp.float32
    x = x_ref[...]            # (TN, D) f32
    xn_t = xn_ref[...]        # (D, Mp) f32 (pre-normalized for 'cos')
    w = w_ref[...]            # (3, D)  f32

    tn, d = x.shape
    mp = xn_t.shape[1]

    # ---- parameter head: 3 per-row <x, w_k> reductions (VPU mul + XLU reduce)
    #      instead of a 3-lane MXU pass + lane-sparse column slicing.
    def _head(idx):
        logit = jnp.sum(x * w[idx:idx + 1, :], axis=1, keepdims=True) + b_ref[idx]
        return jnp.clip(jax.nn.sigmoid(logit), eps, 1.0 - eps)

    a = _head(0)                              # (TN, 1)
    b = _head(1)
    s = _head(2)
    b = a + b * (1.0 - a)

    # ---- similarity matrix: standard K-on-sublane contraction against the
    #      pre-transposed resident x_n (no per-step RHS relayout).
    dn = (((1,), (0,)), ((), ()))
    if similarity == 'dot':
        sim = jax.lax.dot_general(x, xn_t, dn,
                                  preferred_element_type=f32) * (1.0 / d)
    elif similarity == 'cos':
        # x_n was normalized once in the wrapper; only the x row-tile here.
        x_hat = x * (1.0 / jnp.maximum(
            jnp.sqrt(jnp.sum(x * x, axis=1, keepdims=True)), 1e-12))
        sim = jax.lax.dot_general(x_hat, xn_t, dn, preferred_element_type=f32)
    elif similarity == 'l2':
        # -cdist(p=2) via ||x||^2 + ||y||^2 - 2 x.y; ||y||^2 precomputed in the
        # wrapper and resident as a (1, Mp) row.
        x2 = jnp.sum(x * x, axis=1, keepdims=True)                    # (TN, 1)
        xy = jax.lax.dot_general(x, xn_t, dn, preferred_element_type=f32)
        sim = -jnp.sqrt(jnp.maximum(x2 + xn2_ref[...] - 2.0 * xy, 0.0))
    else:
        # TODO(synk): 'l1' (cdist p=1) branch not implemented in-kernel.
        raise NotImplementedError(f"similarity={similarity}")

    padded_cols = mp > m_valid

    # ---- per-row min/max over valid columns (lane-axis reductions).
    #      Column-valid mask is a (1, Mp) iota compare, broadcast on use.
    if padded_cols:
        col_valid = jax.lax.broadcasted_iota(jnp.int32, (1, mp), 1) < m_valid
        sim_min = jnp.min(jnp.where(col_valid, sim, jnp.inf), axis=1,
                          keepdims=True)
        sim_max = jnp.max(jnp.where(col_valid, sim, -jnp.inf), axis=1,
                          keepdims=True)
    else:
        col_valid = None
        sim_min = jnp.min(sim, axis=1, keepdims=True)
        sim_max = jnp.max(sim, axis=1, keepdims=True)
    # Per-row reciprocal, then a VPU multiply over the (TN, Mp) tile.
    sim_norm = (sim - sim_min) * (1.0 / (sim_max - sim_min))

    # ---- top_sims (diagonal zeroed when x is x_n); only (1, Mp) and (TN, 1)
    #      int32 iotas are materialized, the (TN, Mp) compare is a bool mask.
    top_src = sim_norm
    if same_inputs:
        col_ids = jax.lax.broadcasted_iota(jnp.int32, (1, mp), 1)
        row_ids = (jax.lax.broadcasted_iota(jnp.int32, (tn, 1), 0)
                   + pl.program_id(0) * tn)
        top_src = jnp.where(col_ids == row_ids, 0.0, top_src)
    if padded_cols:
        top_src = jnp.where(col_valid, top_src, -jnp.inf)
    top_sims = jnp.max(top_src, axis=1, keepdims=True)

    a = jnp.minimum(a, top_sims) - eps
    inv_s = 1.0 / s                                        # per-row

    # ---- log-space soft mask via logaddexp:
    #      num = clamp(|sn-a|^(1/s), eps)            = exp(lg1c)
    #      den = num + clamp(|b-sn|^(1/s), eps)      = exp(lg1c) + exp(lg2c)
    #      log(num/den) = -log(1 + exp(lg2c - lg1c))
    #      -> 4 EUP ops/element (2 log, 1 exp, 1 log) and no live num/den
    #         temporaries.  |lg2c - lg1c| <= 2*|log eps| so the exp is safe.
    log_eps = f32(math.log(eps))
    lg1 = jnp.maximum(inv_s * jnp.log(jnp.abs(sim_norm - a)), log_eps)
    lg2 = jnp.maximum(inv_s * jnp.log(jnp.abs(b - sim_norm)), log_eps)
    log_soft = -jnp.log(1.0 + jnp.exp(lg2 - lg1))
    log_soft = jnp.where(sim_norm < a, -jnp.inf, log_soft)  # soft_mask = 0
    log_soft = jnp.where(sim_norm > b, 0.0, log_soft)       # soft_mask = 1

    out_ref[...] = (sim + log_soft).astype(out_ref.dtype)


@functools.lru_cache(maxsize=None)
def _vmem_budget():
    """(tile_budget_bytes, vmem_limit_bytes), generation-aware.

    Falls back to a v7x-safe 64 MiB per-core capacity if the hardware query is
    unavailable.  v5e/v6e (128 MiB) end up with ~96 MiB scoped / ~67 MiB tile
    budget; v7x (64 MiB) with ~48 MiB scoped / ~33 MiB tile budget.
    """
    cap = 64 * 1024 * 1024
    try:
        info = pltpu.get_tpu_info()
        cap = int(getattr(info, "vmem_capacity_bytes", cap)) or cap
    except Exception:
        pass
    limit = min((cap * 3) // 4, cap - 4 * 1024 * 1024)
    limit = max(limit, 16 * 1024 * 1024)
    budget = (limit * 7) // 10
    return budget, limit


def _choose_tile_n(n_pad8, m_pad, d, budget, xn_bufs, has_xn2):
    # Resident grid-invariant blocks: x_n^T (+ optional ||x_n||^2) + weights,
    # xn_bufs copies each (1 with pl.Buffered(1), else 2).
    fixed = xn_bufs * 4 * (m_pad * d + 3 * d + (m_pad if has_xn2 else 0))
    # ~8 live (TN, Mp) f32 temporaries + double-buffered x / out row tiles.
    per_row = 4 * (8 * m_pad + 2 * m_pad + 2 * d)
    tn = max(budget - fixed, 8 * per_row) // per_row
    tn = max(8, (tn // 8) * 8)
    tn = min(tn, n_pad8, 2048)
    # Keep >= 2 grid steps when N allows so v7x's two TensorCores both get work
    # under dimension_semantics=("parallel",).
    if n_pad8 >= 16:
        tn = min(tn, max(8, ((n_pad8 // 2) // 8) * 8))
    return int(tn)


@functools.partial(jax.jit, static_argnames=("similarity", "same_inputs", "eps",
                                             "single_buffer", "set_vmem_limit"))
def _pointwise_soft_mask(x, x_n, w, bias, *, similarity, same_inputs, eps,
                         single_buffer, set_vmem_limit):
    f32 = jnp.float32
    n, d = x.shape
    m = x_n.shape[0]

    m_pad = _round_up(max(m, 128), 128)        # lane-dense output stores
    n_pad8 = _round_up(n, 8)

    budget, vmem_limit = _vmem_budget()
    xn_bufs = 1 if single_buffer else 2
    has_xn2 = similarity == 'l2'
    tn = _choose_tile_n(n_pad8, m_pad, d, budget, xn_bufs, has_xn2)
    n_pad = _round_up(n, tn)

    x_p = jnp.pad(x.astype(f32), ((0, n_pad - n), (0, 0)))

    # ---- hoisted x_n-derived work (done once, not once per grid step) ----
    xn_f = x_n.astype(f32)
    if similarity == 'cos':
        xn_f = xn_f * (1.0 / jnp.maximum(
            jnp.sqrt(jnp.sum(xn_f * xn_f, axis=1, keepdims=True)), 1e-12))
    xn_p = jnp.pad(xn_f, ((0, m_pad - m), (0, 0)))
    xn_t = xn_p.T                              # (D, Mp): MXU-friendly RHS layout
    w_p = w.astype(f32)                        # (3, D), used row-wise
    b_p = bias.astype(f32).reshape(3)

    # Grid-invariant inputs: single-buffer them when supported.
    invariant = {"pipeline_mode": pl.Buffered(1)} if single_buffer else {}
    in_specs = [pl.BlockSpec((tn, d), lambda i: (i, 0)),            # x row tile
                pl.BlockSpec((d, m_pad), lambda i: (0, 0), **invariant)]
    operands = [x_p, xn_t]
    if has_xn2:
        xn2 = jnp.sum(xn_p * xn_p, axis=1).reshape(1, m_pad)        # ||x_n||^2
        in_specs.append(pl.BlockSpec((1, m_pad), lambda i: (0, 0), **invariant))
        operands.append(xn2)
    in_specs += [pl.BlockSpec((3, d), lambda i: (0, 0), **invariant),
                 pl.BlockSpec(memory_space=pltpu.MemorySpace.SMEM)]  # bias
    operands += [w_p, b_p]

    kernel = functools.partial(
        _pointwise_soft_mask_kernel,
        similarity=similarity, same_inputs=same_inputs, eps=eps, m_valid=m)

    cp_kwargs = dict(dimension_semantics=("parallel",))
    if set_vmem_limit:
        cp_kwargs["vmem_limit_bytes"] = int(vmem_limit)

    out = pl.pallas_call(
        kernel,
        out_shape=jax.ShapeDtypeStruct((n_pad, m_pad), f32),
        grid=(n_pad // tn,),
        in_specs=in_specs,
        out_specs=pl.BlockSpec((tn, m_pad), lambda i: (i, 0)),
        compiler_params=pltpu.CompilerParams(**cp_kwargs),
    )(*operands)
    return out[:n, :m]


# Runtime feature fallbacks (flipped off once if the jax version / backend
# rejects pl.Buffered(1) or the explicit vmem limit).
_CONFIG = {"single_buffer": True, "set_vmem_limit": True}


def pointwise_soft_mask(x, x_n, w, bias, similarity='dot', eps=EPS,
                        same_inputs=None):
    """x: (N, D), x_n: (M, D), w: (3, D) Linear weight, bias: (3,).

    `same_inputs` replaces torch.equal(x, x_n): pass True explicitly when x
    and x_n are equal arrays; defaults to a host-side `x is x_n` identity
    check (no device compare / sync, jit-safe).
    """
    if same_inputs is None:
        same_inputs = x is x_n
    kw = dict(similarity=similarity, same_inputs=bool(same_inputs),
              eps=float(eps))
    while True:
        try:
            return _pointwise_soft_mask(
                x, x_n, w, bias,
                single_buffer=_CONFIG["single_buffer"],
                set_vmem_limit=_CONFIG["set_vmem_limit"], **kw)
        except NotImplementedError:
            raise
        except Exception:
            if _CONFIG["single_buffer"]:
                _CONFIG["single_buffer"] = False       # Buffered(1) unsupported
            elif _CONFIG["set_vmem_limit"]:
                _CONFIG["set_vmem_limit"] = False      # vmem limit rejected
            else:
                raise


# -------------------- pure-JAX reference (direct torch port) -----------------
def _reference(x, x_n, w, bias, similarity, same_inputs, eps):
    f32 = jnp.float32
    hp = jax.lax.Precision.HIGHEST
    x = x.astype(f32)
    xn = x_n.astype(f32)
    logits = jnp.dot(x, w.astype(f32).T, precision=hp) + bias.astype(f32)
    params = jnp.clip(jax.nn.sigmoid(logits), eps, 1.0 - eps)
    a, b, s = params[:, 0:1], params[:, 1:2], params[:, 2:3]
    b = a + b * (1.0 - a)
    if similarity == 'dot':
        sim = jnp.dot(x, xn.T, precision=hp) / x.shape[1]
    elif similarity == 'cos':
        xh = x / jnp.maximum(jnp.sqrt(jnp.sum(x * x, 1, keepdims=True)), 1e-12)
        xnh = xn / jnp.maximum(jnp.sqrt(jnp.sum(xn * xn, 1, keepdims=True)), 1e-12)
        sim = jnp.dot(xh, xnh.T, precision=hp)
    elif similarity == 'l2':
        d2 = jnp.sum((x[:, None, :] - xn[None, :, :]) ** 2, axis=-1)
        sim = -jnp.sqrt(jnp.maximum(d2, 0.0))
    else:
        raise NotImplementedError(similarity)
    smin = jnp.min(sim, axis=1, keepdims=True)
    smax = jnp.max(sim, axis=1, keepdims=True)
    sn = (sim - smin) / (smax - smin)
    if same_inputs:
        top = jnp.max(sn - jnp.diag(jnp.diag(sn)), axis=1, keepdims=True)
    else:
        top = jnp.max(sn, axis=1, keepdims=True)
    a = jnp.minimum(a, top) - eps
    num = jnp.maximum(jnp.abs(sn - a) ** (1.0 / s), eps)
    den = num + jnp.maximum(jnp.abs(b - sn) ** (1.0 / s), eps)
    sm = num / den
    sm = jnp.where(sn < a, 0.0, sm)
    sm = jnp.where(sn > b, 1.0, sm)
    return sim + jnp.log(sm), sim


if __name__ == "__main__":
    key = jax.random.PRNGKey(0)
    k1, k2, k3, k4 = jax.random.split(key, 4)

    N, D = 8, 32   # points x features (dims=[32] -> Linear(32, 3) + Sigmoid)
    x = jax.random.normal(k1, (N, D), jnp.float32)
    x_n = jax.random.normal(k2, (N, D), jnp.float32)

    # Deterministic nn.Linear(D, 3)-style init: U(-1/sqrt(D), 1/sqrt(D)).
    bound = 1.0 / float(np.sqrt(D))
    w = jax.random.uniform(k3, (3, D), jnp.float32, -bound, bound)
    bias = jax.random.uniform(k4, (3,), jnp.float32, -bound, bound)

    def _check(out, x_, xn_, similarity, same_inputs):
        ref, sim_ref = _reference(x_, xn_, w, bias, similarity, same_inputs, EPS)
        out = np.asarray(out)
        ref = np.asarray(ref)
        sim_ref = np.asarray(sim_ref)
        assert out.shape == ref.shape
        assert not np.isnan(out).any()
        # (1) soft-mask space (exp(out - sim) in [0, 1]): robust near the
        #     log singularities, validates the mask logic everywhere.
        np.testing.assert_allclose(np.exp(out - sim_ref), np.exp(ref - sim_ref),
                                   atol=2e-2, rtol=0)
        # (2) full output away from the steep log region (soft_mask > e^-1).
        mask = np.isfinite(ref) & ((ref - sim_ref) > -1.0)
        assert mask.any()
        np.testing.assert_allclose(out[mask], ref[mask], atol=5e-2, rtol=5e-2)

    out_dot = pointwise_soft_mask(x, x_n, w, bias, similarity='dot')
    jax.block_until_ready(out_dot)
    _check(out_dot, x, x_n, 'dot', False)

    # x is x -> diagonal-masked top_sims path, 'cos' similarity.
    out_cos = pointwise_soft_mask(x, x, w, bias, similarity='cos')
    jax.block_until_ready(out_cos)
    _check(out_cos, x, x, 'cos', True)

    out_l2 = pointwise_soft_mask(x, x_n, w, bias, similarity='l2')
    jax.block_until_ready(out_l2)
    _check(out_l2, x, x_n, 'l2', False)

    assert out_dot.shape == (N, N) and out_cos.shape == (N, N)
    print("KERNEL_OK")
</pallas_src>

<mosaic_0001>
module attributes {stable_mosaic.version = 11 : i64} {
  func.func @_pointwise_soft_mask_kernel(%arg0: i32, %arg1: memref<8x32xf32, #tpu.memory_space<vmem>>, %arg2: memref<32x128xf32, #tpu.memory_space<vmem>>, %arg3: memref<3x32xf32, #tpu.memory_space<vmem>>, %arg4: memref<3xf32, #tpu.memory_space<smem>>, %arg5: memref<8x128xf32, #tpu.memory_space<vmem>>) attributes {dimension_semantics = [#tpu.dimension_semantics<parallel>], iteration_bounds = array<i64: 1>, scalar_prefetch = 0 : i64, scratch_operands = 0 : i64, tpu.core_type = #tpu.core_type<tc>, window_params = [{transform_indices = @transform_0, window_bounds = array<i64: 8, 32>}, {pipeline_mode = #tpu.pipeline_mode<synchronous>, transform_indices = @transform_1, window_bounds = array<i64: 32, 128>}, {pipeline_mode = #tpu.pipeline_mode<synchronous>, transform_indices = @transform_2, window_bounds = array<i64: 3, 32>}, {transform_indices = @transform_3, window_bounds = array<i64: 3>}, {transform_indices = @transform_4, window_bounds = array<i64: 8, 128>}]} {
    %c0 = arith.constant 0 : index
    %c0_0 = arith.constant 0 : index
    %0 = vector.load %arg1[%c0, %c0_0] : memref<8x32xf32, #tpu.memory_space<vmem>>, vector<8x32xf32>
    %c0_1 = arith.constant 0 : index
    %c0_2 = arith.constant 0 : index
    %1 = vector.load %arg2[%c0_1, %c0_2] : memref<32x128xf32, #tpu.memory_space<vmem>>, vector<32x128xf32>
    %c0_3 = arith.constant 0 : index
    %c0_4 = arith.constant 0 : index
    %2 = vector.load %arg3[%c0_3, %c0_4] : memref<3x32xf32, #tpu.memory_space<vmem>>, vector<3x32xf32>
    %3 = vector.extract_strided_slice %2 {offsets = [0, 0], sizes = [1, 32], strides = [1, 1]} : vector<3x32xf32> to vector<1x32xf32>
    %4 = vector.broadcast %3 : vector<1x32xf32> to vector<8x32xf32>
    %5 = arith.mulf %0, %4 : vector<8x32xf32>
    %cst = arith.constant dense<0.000000e+00> : vector<8xf32>
    %6 = vector.multi_reduction <add>, %5, %cst [1] : vector<8x32xf32> to vector<8xf32>
    %7 = vector.shape_cast %6 : vector<8xf32> to vector<8x1xf32>
    %c0_5 = arith.constant 0 : index
    %8 = memref.load %arg4[%c0_5] : memref<3xf32, #tpu.memory_space<smem>>
    %9 = vector.broadcast %8 : f32 to vector<8x1xf32>
    %10 = arith.addf %7, %9 : vector<8x1xf32>
    %11 = arith.negf %10 : vector<8x1xf32>
    %12 = math.exp %11 : vector<8x1xf32>
    %cst_6 = arith.constant 1.000000e+00 : f32
    %13 = vector.broadcast %cst_6 : f32 to vector<8x1xf32>
    %14 = arith.addf %13, %12 : vector<8x1xf32>
    %15 = arith.divf %13, %14 : vector<8x1xf32>
    %cst_7 = arith.constant 9.99999996E-13 : f32
    %cst_8 = arith.constant 1.000000e+00 : f32
    %16 = vector.broadcast %cst_7 : f32 to vector<8x1xf32>
    %17 = arith.maximumf %16, %15 : vector<8x1xf32>
    %18 = vector.broadcast %cst_8 : f32 to vector<8x1xf32>
    %19 = arith.minimumf %18, %17 : vector<8x1xf32>
    %20 = vector.extract_strided_slice %2 {offsets = [1, 0], sizes = [1, 32], strides = [1, 1]} : vector<3x32xf32> to vector<1x32xf32>
    %21 = vector.broadcast %20 : vector<1x32xf32> to vector<8x32xf32>
    %22 = arith.mulf %0, %21 : vector<8x32xf32>
    %cst_9 = arith.constant dense<0.000000e+00> : vector<8xf32>
    %23 = vector.multi_reduction <add>, %22, %cst_9 [1] : vector<8x32xf32> to vector<8xf32>
    %24 = vector.shape_cast %23 : vector<8xf32> to vector<8x1xf32>
    %c1 = arith.constant 1 : index
    %25 = memref.load %arg4[%c1] : memref<3xf32, #tpu.memory_space<smem>>
    %26 = vector.broadcast %25 : f32 to vector<8x1xf32>
    %27 = arith.addf %24, %26 : vector<8x1xf32>
    %28 = arith.negf %27 : vector<8x1xf32>
    %29 = math.exp %28 : vector<8x1xf32>
    %cst_10 = arith.constant 1.000000e+00 : f32
    %30 = vector.broadcast %cst_10 : f32 to vector<8x1xf32>
    %31 = arith.addf %30, %29 : vector<8x1xf32>
    %32 = arith.divf %30, %31 : vector<8x1xf32>
    %cst_11 = arith.constant 9.99999996E-13 : f32
    %cst_12 = arith.constant 1.000000e+00 : f32
    %33 = vector.broadcast %cst_11 : f32 to vector<8x1xf32>
    %34 = arith.maximumf %33, %32 : vector<8x1xf32>
    %35 = vector.broadcast %cst_12 : f32 to vector<8x1xf32>
    %36 = arith.minimumf %35, %34 : vector<8x1xf32>
    %37 = vector.extract_strided_slice %2 {offsets = [2, 0], sizes = [1, 32], strides = [1, 1]} : vector<3x32xf32> to vector<1x32xf32>
    %38 = vector.broadcast %37 : vector<1x32xf32> to vector<8x32xf32>
    %39 = arith.mulf %0, %38 : vector<8x32xf32>
    %cst_13 = arith.constant dense<0.000000e+00> : vector<8xf32>
    %40 = vector.multi_reduction <add>, %39, %cst_13 [1] : vector<8x32xf32> to vector<8xf32>
    %41 = vector.shape_cast %40 : vector<8xf32> to vector<8x1xf32>
    %c2 = arith.constant 2 : index
    %42 = memref.load %arg4[%c2] : memref<3xf32, #tpu.memory_space<smem>>
    %43 = vector.broadcast %42 : f32 to vector<8x1xf32>
    %44 = arith.addf %41, %43 : vector<8x1xf32>
    %45 = arith.negf %44 : vector<8x1xf32>
    %46 = math.exp %45 : vector<8x1xf32>
    %cst_14 = arith.constant 1.000000e+00 : f32
    %47 = vector.broadcast %cst_14 : f32 to vector<8x1xf32>
    %48 = arith.addf %47, %46 : vector<8x1xf32>
    %49 = arith.divf %47, %48 : vector<8x1xf32>
    %cst_15 = arith.constant 9.99999996E-13 : f32
    %cst_16 = arith.constant 1.000000e+00 : f32
    %50 = vector.broadcast %cst_15 : f32 to vector<8x1xf32>
    %51 = arith.maximumf %50, %49 : vector<8x1xf32>
    %52 = vector.broadcast %cst_16 : f32 to vector<8x1xf32>
    %53 = arith.minimumf %52, %51 : vector<8x1xf32>
    %cst_17 = arith.constant 1.000000e+00 : f32
    %54 = vector.broadcast %cst_17 : f32 to vector<8x1xf32>
    %55 = arith.subf %54, %19 : vector<8x1xf32>
    %56 = arith.mulf %36, %55 : vector<8x1xf32>
    %57 = arith.addf %19, %56 : vector<8x1xf32>
    %cst_18 = arith.constant dense<0.000000e+00> : vector<8x128xf32>
    %58 = tpu.matmul %0, %1, %cst_18 {dimension_numbers = #tpu.dot_dimension_numbers<[1], [0], [0], [1], [0, 0, 1, 1], [], []>} : vector<8x32xf32>, vector<32x128xf32>, vector<8x128xf32> -> vector<8x128xf32>
    %cst_19 = arith.constant 3.125000e-02 : f32
    %59 = vector.broadcast %cst_19 : f32 to vector<8x128xf32>
    %60 = arith.mulf %58, %59 : vector<8x128xf32>
    %61 = tpu.iota {dimensions = array<i32: 1>} : vector<1x128xi32>
    %c8_i32 = arith.constant 8 : i32
    %62 = vector.broadcast %c8_i32 : i32 to vector<1x128xi32>
    %63 = arith.cmpi slt, %61, %62 : vector<1x128xi32>
    %cst_20 = arith.constant 0x7F800000 : f32
    %64 = vector.shape_cast %63 : vector<1x128xi1> to vector<1x128xi1>
    %65 = vector.broadcast %64 : vector<1x128xi1> to vector<8x128xi1>
    %66 = vector.broadcast %cst_20 : f32 to vector<8x128xf32>
    %67 = arith.select %65, %60, %66 : vector<8x128xi1>, vector<8x128xf32>
    %cst_21 = arith.constant dense<0x7F800000> : vector<8xf32>
    %68 = vector.multi_reduction <minimumf>, %67, %cst_21 [1] : vector<8x128xf32> to vector<8xf32>
    %69 = vector.shape_cast %68 : vector<8xf32> to vector<8x1xf32>
    %cst_22 = arith.constant 0xFF800000 : f32
    %70 = vector.shape_cast %63 : vector<1x128xi1> to vector<1x128xi1>
    %71 = vector.broadcast %70 : vector<1x128xi1> to vector<8x128xi1>
    %72 = vector.broadcast %cst_22 : f32 to vector<8x128xf32>
    %73 = arith.select %71, %60, %72 : vector<8x128xi1>, vector<8x128xf32>
    %cst_23 = arith.constant dense<0xFF800000> : vector<8xf32>
    %74 = vector.multi_reduction <maximumf>, %73, %cst_23 [1] : vector<8x128xf32> to vector<8xf32>
    %75 = vector.shape_cast %74 : vector<8xf32> to vector<8x1xf32>
    %76 = vector.broadcast %69 : vector<8x1xf32> to vector<8x128xf32>
    %77 = arith.subf %60, %76 : vector<8x128xf32>
    %78 = arith.subf %75, %69 : vector<8x1xf32>
    %cst_24 = arith.constant 1.000000e+00 : f32
    %79 = vector.broadcast %cst_24 : f32 to vector<8x1xf32>
    %80 = arith.divf %79, %78 : vector<8x1xf32>
    %81 = vector.broadcast %80 : vector<8x1xf32> to vector<8x128xf32>
    %82 = arith.mulf %77, %81 : vector<8x128xf32>
    %cst_25 = arith.constant 0xFF800000 : f32
    %83 = vector.shape_cast %63 : vector<1x128xi1> to vector<1x128xi1>
    %84 = vector.broadcast %83 : vector<1x128xi1> to vector<8x128xi1>
    %85 = vector.broadcast %cst_25 : f32 to vector<8x128xf32>
    %86 = arith.select %84, %82, %85 : vector<8x128xi1>, vector<8x128xf32>
    %cst_26 = arith.constant dense<0xFF800000> : vector<8xf32>
    %87 = vector.multi_reduction <maximumf>, %86, %cst_26 [1] : vector<8x128xf32> to vector<8xf32>
    %88 = vector.shape_cast %87 : vector<8xf32> to vector<8x1xf32>
    %89 = arith.minimumf %19, %88 : vector<8x1xf32>
    %cst_27 = arith.constant 9.99999996E-13 : f32
    %90 = vector.broadcast %cst_27 : f32 to vector<8x1xf32>
    %91 = arith.subf %89, %90 : vector<8x1xf32>
    %cst_28 = arith.constant 1.000000e+00 : f32
    %92 = vector.broadcast %cst_28 : f32 to vector<8x1xf32>
    %93 = arith.divf %92, %53 : vector<8x1xf32>
    %94 = vector.broadcast %91 : vector<8x1xf32> to vector<8x128xf32>
    %95 = arith.subf %82, %94 : vector<8x128xf32>
    %96 = math.absf %95 : vector<8x128xf32>
    %97 = math.log %96 : vector<8x128xf32>
    %98 = vector.broadcast %93 : vector<8x1xf32> to vector<8x128xf32>
    %99 = arith.mulf %98, %97 : vector<8x128xf32>
    %cst_29 = arith.constant -27.6310215 : f32
    %100 = vector.broadcast %cst_29 : f32 to vector<8x128xf32>
    %101 = arith.maximumf %99, %100 : vector<8x128xf32>
    %102 = vector.broadcast %57 : vector<8x1xf32> to vector<8x128xf32>
    %103 = arith.subf %102, %82 : vector<8x128xf32>
    %104 = math.absf %103 : vector<8x128xf32>
    %105 = math.log %104 : vector<8x128xf32>
    %106 = vector.broadcast %93 : vector<8x1xf32> to vector<8x128xf32>
    %107 = arith.mulf %106, %105 : vector<8x128xf32>
    %cst_30 = arith.constant -27.6310215 : f32
    %108 = vector.broadcast %cst_30 : f32 to vector<8x128xf32>
    %109 = arith.maximumf %107, %108 : vector<8x128xf32>
    %110 = arith.subf %109, %101 : vector<8x128xf32>
    %111 = math.exp %110 : vector<8x128xf32>
    %cst_31 = arith.constant 1.000000e+00 : f32
    %112 = vector.broadcast %cst_31 : f32 to vector<8x128xf32>
    %113 = arith.addf %112, %111 : vector<8x128xf32>
    %114 = math.log %113 : vector<8x128xf32>
    %cst_32 = arith.constant 0.000000e+00 : f32
    %115 = vector.broadcast %cst_32 : f32 to vector<8x128xf32>
    %116 = arith.subf %115, %114 : vector<8x128xf32>
    %117 = vector.broadcast %91 : vector<8x1xf32> to vector<8x128xf32>
    %118 = arith.cmpf olt, %82, %117 : vector<8x128xf32>
    %cst_33 = arith.constant 0xFF800000 : f32
    %119 = vector.broadcast %cst_33 : f32 to vector<8x128xf32>
    %120 = arith.select %118, %119, %116 : vector<8x128xi1>, vector<8x128xf32>
    %121 = vector.broadcast %57 : vector<8x1xf32> to vector<8x128xf32>
    %122 = arith.cmpf ogt, %82, %121 : vector<8x128xf32>
    %cst_34 = arith.constant 0.000000e+00 : f32
    %123 = vector.broadcast %cst_34 : f32 to vector<8x128xf32>
    %124 = arith.select %122, %123, %120 : vector<8x128xi1>, vector<8x128xf32>
    %125 = arith.addf %60, %124 : vector<8x128xf32>
    %c0_35 = arith.constant 0 : index
    %c0_36 = arith.constant 0 : index
    %126 = vector.load %arg5[%c0_35, %c0_36] : memref<8x128xf32, #tpu.memory_space<vmem>>, vector<8x128xf32>
    tpu.vector_store %arg5[%c0_35, %c0_36], %125 {strides = array<i32>} : memref<8x128xf32, #tpu.memory_space<vmem>>, vector<8x128xf32>,
    return
  }
  func.func @transform_0(%arg0: i32) -> (i32, i32) {
    %c0_i32 = arith.constant 0 : i32
    %c0_i32_0 = arith.constant 0 : i32
    return %arg0, %c0_i32 : i32, i32
  }
  func.func @transform_1(%arg0: i32) -> (i32, i32) {
    %c0_i32 = arith.constant 0 : i32
    %c0_i32_0 = arith.constant 0 : i32
    %c0_i32_1 = arith.constant 0 : i32
    return %c0_i32, %c0_i32_0 : i32, i32
  }
  func.func @transform_2(%arg0: i32) -> (i32, i32) {
    %c0_i32 = arith.constant 0 : i32
    %c0_i32_0 = arith.constant 0 : i32
    %c0_i32_1 = arith.constant 0 : i32
    return %c0_i32, %c0_i32_0 : i32, i32
  }
  func.func @transform_3(%arg0: i32) -> i32 {
    %c0_i32 = arith.constant 0 : i32
    %c0_i32_0 = arith.constant 0 : i32
    return %c0_i32 : i32
  }
  func.func @transform_4(%arg0: i32) -> (i32, i32) {
    %c0_i32 = arith.constant 0 : i32
    %c0_i32_0 = arith.constant 0 : i32
    return %arg0, %c0_i32 : i32, i32
  }
}

module attributes {stable_mosaic.version = 11 : i64} {
  func.func @_pointwise_soft_mask_kernel(%arg0: i32, %arg1: memref<8x32xf32, #tpu.memory_space<vmem>>, %arg2: memref<32x128xf32, #tpu.memory_space<vmem>>, %arg3: memref<3x32xf32, #tpu.memory_space<vmem>>, %arg4: memref<3xf32, #tpu.memory_space<smem>>, %arg5: memref<8x128xf32, #tpu.memory_space<vmem>>) attributes {dimension_semantics = [#tpu.dimension_semantics<parallel>], iteration_bounds = array<i64: 1>, scalar_prefetch = 0 : i64, scratch_operands = 0 : i64, tpu.core_type = #tpu.core_type<tc>, window_params = [{transform_indices = @transform_0, window_bounds = array<i64: 8, 32>}, {pipeline_mode = #tpu.pipeline_mode<synchronous>, transform_indices = @transform_1, window_bounds = array<i64: 32, 128>}, {pipeline_mode = #tpu.pipeline_mode<synchronous>, transform_indices = @transform_2, window_bounds = array<i64: 3, 32>}, {transform_indices = @transform_3, window_bounds = array<i64: 3>}, {transform_indices = @transform_4, window_bounds = array<i64: 8, 128>}]} {
    %c0 = arith.constant 0 : index
    %c0_0 = arith.constant 0 : index
    %0 = vector.load %arg1[%c0, %c0_0] : memref<8x32xf32, #tpu.memory_space<vmem>>, vector<8x32xf32>
    %c0_1 = arith.constant 0 : index
    %c0_2 = arith.constant 0 : index
    %1 = vector.load %arg2[%c0_1, %c0_2] : memref<32x128xf32, #tpu.memory_space<vmem>>, vector<32x128xf32>
    %c0_3 = arith.constant 0 : index
    %c0_4 = arith.constant 0 : index
    %2 = vector.load %arg3[%c0_3, %c0_4] : memref<3x32xf32, #tpu.memory_space<vmem>>, vector<3x32xf32>
    %3 = vector.extract_strided_slice %2 {offsets = [0, 0], sizes = [1, 32], strides = [1, 1]} : vector<3x32xf32> to vector<1x32xf32>
    %4 = vector.broadcast %3 : vector<1x32xf32> to vector<8x32xf32>
    %5 = arith.mulf %0, %4 : vector<8x32xf32>
    %cst = arith.constant dense<0.000000e+00> : vector<8xf32>
    %6 = vector.multi_reduction <add>, %5, %cst [1] : vector<8x32xf32> to vector<8xf32>
    %7 = vector.shape_cast %6 : vector<8xf32> to vector<8x1xf32>
    %c0_5 = arith.constant 0 : index
    %8 = memref.load %arg4[%c0_5] : memref<3xf32, #tpu.memory_space<smem>>
    %9 = vector.broadcast %8 : f32 to vector<8x1xf32>
    %10 = arith.addf %7, %9 : vector<8x1xf32>
    %11 = arith.negf %10 : vector<8x1xf32>
    %12 = math.exp %11 : vector<8x1xf32>
    %cst_6 = arith.constant 1.000000e+00 : f32
    %13 = vector.broadcast %cst_6 : f32 to vector<8x1xf32>
    %14 = arith.addf %13, %12 : vector<8x1xf32>
    %15 = arith.divf %13, %14 : vector<8x1xf32>
    %cst_7 = arith.constant 9.99999996E-13 : f32
    %cst_8 = arith.constant 1.000000e+00 : f32
    %16 = vector.broadcast %cst_7 : f32 to vector<8x1xf32>
    %17 = arith.maximumf %16, %15 : vector<8x1xf32>
    %18 = vector.broadcast %cst_8 : f32 to vector<8x1xf32>
    %19 = arith.minimumf %18, %17 : vector<8x1xf32>
    %20 = vector.extract_strided_slice %2 {offsets = [1, 0], sizes = [1, 32], strides = [1, 1]} : vector<3x32xf32> to vector<1x32xf32>
    %21 = vector.broadcast %20 : vector<1x32xf32> to vector<8x32xf32>
    %22 = arith.mulf %0, %21 : vector<8x32xf32>
    %cst_9 = arith.constant dense<0.000000e+00> : vector<8xf32>
    %23 = vector.multi_reduction <add>, %22, %cst_9 [1] : vector<8x32xf32> to vector<8xf32>
    %24 = vector.shape_cast %23 : vector<8xf32> to vector<8x1xf32>
    %c1 = arith.constant 1 : index
    %25 = memref.load %arg4[%c1] : memref<3xf32, #tpu.memory_space<smem>>
    %26 = vector.broadcast %25 : f32 to vector<8x1xf32>
    %27 = arith.addf %24, %26 : vector<8x1xf32>
    %28 = arith.negf %27 : vector<8x1xf32>
    %29 = math.exp %28 : vector<8x1xf32>
    %cst_10 = arith.constant 1.000000e+00 : f32
    %30 = vector.broadcast %cst_10 : f32 to vector<8x1xf32>
    %31 = arith.addf %30, %29 : vector<8x1xf32>
    %32 = arith.divf %30, %31 : vector<8x1xf32>
    %cst_11 = arith.constant 9.99999996E-13 : f32
    %cst_12 = arith.constant 1.000000e+00 : f32
    %33 = vector.broadcast %cst_11 : f32 to vector<8x1xf32>
    %34 = arith.maximumf %33, %32 : vector<8x1xf32>
    %35 = vector.broadcast %cst_12 : f32 to vector<8x1xf32>
    %36 = arith.minimumf %35, %34 : vector<8x1xf32>
    %37 = vector.extract_strided_slice %2 {offsets = [2, 0], sizes = [1, 32], strides = [1, 1]} : vector<3x32xf32> to vector<1x32xf32>
    %38 = vector.broadcast %37 : vector<1x32xf32> to vector<8x32xf32>
    %39 = arith.mulf %0, %38 : vector<8x32xf32>
    %cst_13 = arith.constant dense<0.000000e+00> : vector<8xf32>
    %40 = vector.multi_reduction <add>, %39, %cst_13 [1] : vector<8x32xf32> to vector<8xf32>
    %41 = vector.shape_cast %40 : vector<8xf32> to vector<8x1xf32>
    %c2 = arith.constant 2 : index
    %42 = memref.load %arg4[%c2] : memref<3xf32, #tpu.memory_space<smem>>
    %43 = vector.broadcast %42 : f32 to vector<8x1xf32>
    %44 = arith.addf %41, %43 : vector<8x1xf32>
    %45 = arith.negf %44 : vector<8x1xf32>
    %46 = math.exp %45 : vector<8x1xf32>
    %cst_14 = arith.constant 1.000000e+00 : f32
    %47 = vector.broadcast %cst_14 : f32 to vector<8x1xf32>
    %48 = arith.addf %47, %46 : vector<8x1xf32>
    %49 = arith.divf %47, %48 : vector<8x1xf32>
    %cst_15 = arith.constant 9.99999996E-13 : f32
    %cst_16 = arith.constant 1.000000e+00 : f32
    %50 = vector.broadcast %cst_15 : f32 to vector<8x1xf32>
    %51 = arith.maximumf %50, %49 : vector<8x1xf32>
    %52 = vector.broadcast %cst_16 : f32 to vector<8x1xf32>
    %53 = arith.minimumf %52, %51 : vector<8x1xf32>
    %cst_17 = arith.constant 1.000000e+00 : f32
    %54 = vector.broadcast %cst_17 : f32 to vector<8x1xf32>
    %55 = arith.subf %54, %19 : vector<8x1xf32>
    %56 = arith.mulf %36, %55 : vector<8x1xf32>
    %57 = arith.addf %19, %56 : vector<8x1xf32>
    %cst_18 = arith.constant dense<0.000000e+00> : vector<8x128xf32>
    %58 = tpu.matmul %0, %1, %cst_18 {dimension_numbers = #tpu.dot_dimension_numbers<[1], [0], [0], [1], [0, 0, 1, 1], [], []>} : vector<8x32xf32>, vector<32x128xf32>, vector<8x128xf32> -> vector<8x128xf32>
    %cst_19 = arith.constant 3.125000e-02 : f32
    %59 = vector.broadcast %cst_19 : f32 to vector<8x128xf32>
    %60 = arith.mulf %58, %59 : vector<8x128xf32>
    %61 = tpu.iota {dimensions = array<i32: 1>} : vector<1x128xi32>
    %c8_i32 = arith.constant 8 : i32
    %62 = vector.broadcast %c8_i32 : i32 to vector<1x128xi32>
    %63 = arith.cmpi slt, %61, %62 : vector<1x128xi32>
    %cst_20 = arith.constant 0x7F800000 : f32
    %64 = vector.shape_cast %63 : vector<1x128xi1> to vector<1x128xi1>
    %65 = vector.broadcast %64 : vector<1x128xi1> to vector<8x128xi1>
    %66 = vector.broadcast %cst_20 : f32 to vector<8x128xf32>
    %67 = arith.select %65, %60, %66 : vector<8x128xi1>, vector<8x128xf32>
    %cst_21 = arith.constant dense<0x7F800000> : vector<8xf32>
    %68 = vector.multi_reduction <minimumf>, %67, %cst_21 [1] : vector<8x128xf32> to vector<8xf32>
    %69 = vector.shape_cast %68 : vector<8xf32> to vector<8x1xf32>
    %cst_22 = arith.constant 0xFF800000 : f32
    %70 = vector.shape_cast %63 : vector<1x128xi1> to vector<1x128xi1>
    %71 = vector.broadcast %70 : vector<1x128xi1> to vector<8x128xi1>
    %72 = vector.broadcast %cst_22 : f32 to vector<8x128xf32>
    %73 = arith.select %71, %60, %72 : vector<8x128xi1>, vector<8x128xf32>
    %cst_23 = arith.constant dense<0xFF800000> : vector<8xf32>
    %74 = vector.multi_reduction <maximumf>, %73, %cst_23 [1] : vector<8x128xf32> to vector<8xf32>
    %75 = vector.shape_cast %74 : vector<8xf32> to vector<8x1xf32>
    %76 = vector.broadcast %69 : vector<8x1xf32> to vector<8x128xf32>
    %77 = arith.subf %60, %76 : vector<8x128xf32>
    %78 = arith.subf %75, %69 : vector<8x1xf32>
    %cst_24 = arith.constant 1.000000e+00 : f32
    %79 = vector.broadcast %cst_24 : f32 to vector<8x1xf32>
    %80 = arith.divf %79, %78 : vector<8x1xf32>
    %81 = vector.broadcast %80 : vector<8x1xf32> to vector<8x128xf32>
    %82 = arith.mulf %77, %81 : vector<8x128xf32>
    %cst_25 = arith.constant 0xFF800000 : f32
    %83 = vector.shape_cast %63 : vector<1x128xi1> to vector<1x128xi1>
    %84 = vector.broadcast %83 : vector<1x128xi1> to vector<8x128xi1>
    %85 = vector.broadcast %cst_25 : f32 to vector<8x128xf32>
    %86 = arith.select %84, %82, %85 : vector<8x128xi1>, vector<8x128xf32>
    %cst_26 = arith.constant dense<0xFF800000> : vector<8xf32>
    %87 = vector.multi_reduction <maximumf>, %86, %cst_26 [1] : vector<8x128xf32> to vector<8xf32>
    %88 = vector.shape_cast %87 : vector<8xf32> to vector<8x1xf32>
    %89 = arith.minimumf %19, %88 : vector<8x1xf32>
    %cst_27 = arith.constant 9.99999996E-13 : f32
    %90 = vector.broadcast %cst_27 : f32 to vector<8x1xf32>
    %91 = arith.subf %89, %90 : vector<8x1xf32>
    %cst_28 = arith.constant 1.000000e+00 : f32
    %92 = vector.broadcast %cst_28 : f32 to vector<8x1xf32>
    %93 = arith.divf %92, %53 : vector<8x1xf32>
    %94 = vector.broadcast %91 : vector<8x1xf32> to vector<8x128xf32>
    %95 = arith.subf %82, %94 : vector<8x128xf32>
    %96 = math.absf %95 : vector<8x128xf32>
    %97 = math.log %96 : vector<8x128xf32>
    %98 = vector.broadcast %93 : vector<8x1xf32> to vector<8x128xf32>
    %99 = arith.mulf %98, %97 : vector<8x128xf32>
    %cst_29 = arith.constant -27.6310215 : f32
    %100 = vector.broadcast %cst_29 : f32 to vector<8x128xf32>
    %101 = arith.maximumf %99, %100 : vector<8x128xf32>
    %102 = vector.broadcast %57 : vector<8x1xf32> to vector<8x128xf32>
    %103 = arith.subf %102, %82 : vector<8x128xf32>
    %104 = math.absf %103 : vector<8x128xf32>
    %105 = math.log %104 : vector<8x128xf32>
    %106 = vector.broadcast %93 : vector<8x1xf32> to vector<8x128xf32>
    %107 = arith.mulf %106, %105 : vector<8x128xf32>
    %cst_30 = arith.constant -27.6310215 : f32
    %108 = vector.broadcast %cst_30 : f32 to vector<8x128xf32>
    %109 = arith.maximumf %107, %108 : vector<8x128xf32>
    %110 = arith.subf %109, %101 : vector<8x128xf32>
    %111 = math.exp %110 : vector<8x128xf32>
    %cst_31 = arith.constant 1.000000e+00 : f32
    %112 = vector.broadcast %cst_31 : f32 to vector<8x128xf32>
    %113 = arith.addf %112, %111 : vector<8x128xf32>
    %114 = math.log %113 : vector<8x128xf32>
    %cst_32 = arith.constant 0.000000e+00 : f32
    %115 = vector.broadcast %cst_32 : f32 to vector<8x128xf32>
    %116 = arith.subf %115, %114 : vector<8x128xf32>
    %117 = vector.broadcast %91 : vector<8x1xf32> to vector<8x128xf32>
    %118 = arith.cmpf olt, %82, %117 : vector<8x128xf32>
    %cst_33 = arith.constant 0xFF800000 : f32
    %119 = vector.broadcast %cst_33 : f32 to vector<8x128xf32>
    %120 = arith.select %118, %119, %116 : vector<8x128xi1>, vector<8x128xf32>
    %121 = vector.broadcast %57 : vector<8x1xf32> to vector<8x128xf32>
    %122 = arith.cmpf ogt, %82, %121 : vector<8x128xf32>
    %cst_34 = arith.constant 0.000000e+00 : f32
    %123 = vector.broadcast %cst_34 : f32 to vector<8x128xf32>
    %124 = arith.select %122, %123, %120 : vector<8x128xi1>, vector<8x128xf32>
    %125 = arith.addf %60, %124 : vector<8x128xf32>
    %c0_35 = arith.constant 0 : index
    %c0_36 = arith.constant 0 : index
    %126 = vector.load %arg5[%c0_35, %c0_36] : memref<8x128xf32, #tpu.memory_space<vmem>>, vector<8x128xf32>
    tpu.vector_store %arg5[%c0_35, %c0_36], %125 {strides = array<i32>} : memref<8x128xf32, #tpu.memory_space<vmem>>, vector<8x128xf32>,
    return
  }
  func.func @transform_0(%arg0: i32) -> (i32, i32) {
    %c0_i32 = arith.constant 0 : i32
    %c0_i32_0 = arith.constant 0 : i32
    return %arg0, %c0_i32 : i32, i32
  }
  func.func @transform_1(%arg0: i32) -> (i32, i32) {
    %c0_i32 = arith.constant 0 : i32
    %c0_i32_0 = arith.constant 0 : i32
    %c0_i32_1 = arith.constant 0 : i32
    return %c0_i32, %c0_i32_0 : i32, i32
  }
  func.func @transform_2(%arg0: i32) -> (i32, i32) {
    %c0_i32 = arith.constant 0 : i32
    %c0_i32_0 = arith.constant 0 : i32
    %c0_i32_1 = arith.constant 0 : i32
    return %c0_i32, %c0_i32_0 : i32, i32
  }
  func.func @transform_3(%arg0: i32) -> i32 {
    %c0_i32 = arith.constant 0 : i32
    %c0_i32_0 = arith.constant 0 : i32
    return %c0_i32 : i32
  }
  func.func @transform_4(%arg0: i32) -> (i32, i32) {
    %c0_i32 = arith.constant 0 : i32
    %c0_i32_0 = arith.constant 0 : i32
    return %arg0, %c0_i32 : i32, i32
  }
}

module attributes {stable_mosaic.version = 11 : i64} {
  func.func @_pointwise_soft_mask_kernel(%arg0: i32, %arg1: memref<8x32xf32, #tpu.memory_space<vmem>>, %arg2: memref<32x128xf32, #tpu.memory_space<vmem>>, %arg3: memref<3x32xf32, #tpu.memory_space<vmem>>, %arg4: memref<3xf32, #tpu.memory_space<smem>>, %arg5: memref<8x128xf32, #tpu.memory_space<vmem>>) attributes {dimension_semantics = [#tpu.dimension_semantics<parallel>], iteration_bounds = array<i64: 1>, scalar_prefetch = 0 : i64, scratch_operands = 0 : i64, tpu.core_type = #tpu.core_type<tc>, window_params = [{transform_indices = @transform_0, window_bounds = array<i64: 8, 32>}, {pipeline_mode = #tpu.pipeline_mode<synchronous>, transform_indices = @transform_1, window_bounds = array<i64: 32, 128>}, {pipeline_mode = #tpu.pipeline_mode<synchronous>, transform_indices = @transform_2, window_bounds = array<i64: 3, 32>}, {transform_indices = @transform_3, window_bounds = array<i64: 3>}, {transform_indices = @transform_4, window_bounds = array<i64: 8, 128>}]} {
    %c0 = arith.constant 0 : index
    %c0_0 = arith.constant 0 : index
    %0 = vector.load %arg1[%c0, %c0_0] : memref<8x32xf32, #tpu.memory_space<vmem>>, vector<8x32xf32>
    %c0_1 = arith.constant 0 : index
    %c0_2 = arith.constant 0 : index
    %1 = vector.load %arg2[%c0_1, %c0_2] : memref<32x128xf32, #tpu.memory_space<vmem>>, vector<32x128xf32>
    %c0_3 = arith.constant 0 : index
    %c0_4 = arith.constant 0 : index
    %2 = vector.load %arg3[%c0_3, %c0_4] : memref<3x32xf32, #tpu.memory_space<vmem>>, vector<3x32xf32>
    %3 = vector.extract_strided_slice %2 {offsets = [0, 0], sizes = [1, 32], strides = [1, 1]} : vector<3x32xf32> to vector<1x32xf32>
    %4 = vector.broadcast %3 : vector<1x32xf32> to vector<8x32xf32>
    %5 = arith.mulf %0, %4 : vector<8x32xf32>
    %cst = arith.constant dense<0.000000e+00> : vector<8xf32>
    %6 = vector.multi_reduction <add>, %5, %cst [1] : vector<8x32xf32> to vector<8xf32>
    %7 = vector.shape_cast %6 : vector<8xf32> to vector<8x1xf32>
    %c0_5 = arith.constant 0 : index
    %8 = memref.load %arg4[%c0_5] : memref<3xf32, #tpu.memory_space<smem>>
    %9 = vector.broadcast %8 : f32 to vector<8x1xf32>
    %10 = arith.addf %7, %9 : vector<8x1xf32>
    %11 = arith.negf %10 : vector<8x1xf32>
    %12 = math.exp %11 : vector<8x1xf32>
    %cst_6 = arith.constant 1.000000e+00 : f32
    %13 = vector.broadcast %cst_6 : f32 to vector<8x1xf32>
    %14 = arith.addf %13, %12 : vector<8x1xf32>
    %15 = arith.divf %13, %14 : vector<8x1xf32>
    %cst_7 = arith.constant 9.99999996E-13 : f32
    %cst_8 = arith.constant 1.000000e+00 : f32
    %16 = vector.broadcast %cst_7 : f32 to vector<8x1xf32>
    %17 = arith.maximumf %16, %15 : vector<8x1xf32>
    %18 = vector.broadcast %cst_8 : f32 to vector<8x1xf32>
    %19 = arith.minimumf %18, %17 : vector<8x1xf32>
    %20 = vector.extract_strided_slice %2 {offsets = [1, 0], sizes = [1, 32], strides = [1, 1]} : vector<3x32xf32> to vector<1x32xf32>
    %21 = vector.broadcast %20 : vector<1x32xf32> to vector<8x32xf32>
    %22 = arith.mulf %0, %21 : vector<8x32xf32>
    %cst_9 = arith.constant dense<0.000000e+00> : vector<8xf32>
    %23 = vector.multi_reduction <add>, %22, %cst_9 [1] : vector<8x32xf32> to vector<8xf32>
    %24 = vector.shape_cast %23 : vector<8xf32> to vector<8x1xf32>
    %c1 = arith.constant 1 : index
    %25 = memref.load %arg4[%c1] : memref<3xf32, #tpu.memory_space<smem>>
    %26 = vector.broadcast %25 : f32 to vector<8x1xf32>
    %27 = arith.addf %24, %26 : vector<8x1xf32>
    %28 = arith.negf %27 : vector<8x1xf32>
    %29 = math.exp %28 : vector<8x1xf32>
    %cst_10 = arith.constant 1.000000e+00 : f32
    %30 = vector.broadcast %cst_10 : f32 to vector<8x1xf32>
    %31 = arith.addf %30, %29 : vector<8x1xf32>
    %32 = arith.divf %30, %31 : vector<8x1xf32>
    %cst_11 = arith.constant 9.99999996E-13 : f32
    %cst_12 = arith.constant 1.000000e+00 : f32
    %33 = vector.broadcast %cst_11 : f32 to vector<8x1xf32>
    %34 = arith.maximumf %33, %32 : vector<8x1xf32>
    %35 = vector.broadcast %cst_12 : f32 to vector<8x1xf32>
    %36 = arith.minimumf %35, %34 : vector<8x1xf32>
    %37 = vector.extract_strided_slice %2 {offsets = [2, 0], sizes = [1, 32], strides = [1, 1]} : vector<3x32xf32> to vector<1x32xf32>
    %38 = vector.broadcast %37 : vector<1x32xf32> to vector<8x32xf32>
    %39 = arith.mulf %0, %38 : vector<8x32xf32>
    %cst_13 = arith.constant dense<0.000000e+00> : vector<8xf32>
    %40 = vector.multi_reduction <add>, %39, %cst_13 [1] : vector<8x32xf32> to vector<8xf32>
    %41 = vector.shape_cast %40 : vector<8xf32> to vector<8x1xf32>
    %c2 = arith.constant 2 : index
    %42 = memref.load %arg4[%c2] : memref<3xf32, #tpu.memory_space<smem>>
    %43 = vector.broadcast %42 : f32 to vector<8x1xf32>
    %44 = arith.addf %41, %43 : vector<8x1xf32>
    %45 = arith.negf %44 : vector<8x1xf32>
    %46 = math.exp %45 : vector<8x1xf32>
    %cst_14 = arith.constant 1.000000e+00 : f32
    %47 = vector.broadcast %cst_14 : f32 to vector<8x1xf32>
    %48 = arith.addf %47, %46 : vector<8x1xf32>
    %49 = arith.divf %47, %48 : vector<8x1xf32>
    %cst_15 = arith.constant 9.99999996E-13 : f32
    %cst_16 = arith.constant 1.000000e+00 : f32
    %50 = vector.broadcast %cst_15 : f32 to vector<8x1xf32>
    %51 = arith.maximumf %50, %49 : vector<8x1xf32>
    %52 = vector.broadcast %cst_16 : f32 to vector<8x1xf32>
    %53 = arith.minimumf %52, %51 : vector<8x1xf32>
    %cst_17 = arith.constant 1.000000e+00 : f32
    %54 = vector.broadcast %cst_17 : f32 to vector<8x1xf32>
    %55 = arith.subf %54, %19 : vector<8x1xf32>
    %56 = arith.mulf %36, %55 : vector<8x1xf32>
    %57 = arith.addf %19, %56 : vector<8x1xf32>
    %cst_18 = arith.constant dense<0.000000e+00> : vector<8x128xf32>
    %58 = tpu.matmul %0, %1, %cst_18 {dimension_numbers = #tpu.dot_dimension_numbers<[1], [0], [0], [1], [0, 0, 1, 1], [], []>} : vector<8x32xf32>, vector<32x128xf32>, vector<8x128xf32> -> vector<8x128xf32>
    %cst_19 = arith.constant 3.125000e-02 : f32
    %59 = vector.broadcast %cst_19 : f32 to vector<8x128xf32>
    %60 = arith.mulf %58, %59 : vector<8x128xf32>
    %61 = tpu.iota {dimensions = array<i32: 1>} : vector<1x128xi32>
    %c8_i32 = arith.constant 8 : i32
    %62 = vector.broadcast %c8_i32 : i32 to vector<1x128xi32>
    %63 = arith.cmpi slt, %61, %62 : vector<1x128xi32>
    %cst_20 = arith.constant 0x7F800000 : f32
    %64 = vector.shape_cast %63 : vector<1x128xi1> to vector<1x128xi1>
    %65 = vector.broadcast %64 : vector<1x128xi1> to vector<8x128xi1>
    %66 = vector.broadcast %cst_20 : f32 to vector<8x128xf32>
    %67 = arith.select %65, %60, %66 : vector<8x128xi1>, vector<8x128xf32>
    %cst_21 = arith.constant dense<0x7F800000> : vector<8xf32>
    %68 = vector.multi_reduction <minimumf>, %67, %cst_21 [1] : vector<8x128xf32> to vector<8xf32>
    %69 = vector.shape_cast %68 : vector<8xf32> to vector<8x1xf32>
    %cst_22 = arith.constant 0xFF800000 : f32
    %70 = vector.shape_cast %63 : vector<1x128xi1> to vector<1x128xi1>
    %71 = vector.broadcast %70 : vector<1x128xi1> to vector<8x128xi1>
    %72 = vector.broadcast %cst_22 : f32 to vector<8x128xf32>
    %73 = arith.select %71, %60, %72 : vector<8x128xi1>, vector<8x128xf32>
    %cst_23 = arith.constant dense<0xFF800000> : vector<8xf32>
    %74 = vector.multi_reduction <maximumf>, %73, %cst_23 [1] : vector<8x128xf32> to vector<8xf32>
    %75 = vector.shape_cast %74 : vector<8xf32> to vector<8x1xf32>
    %76 = vector.broadcast %69 : vector<8x1xf32> to vector<8x128xf32>
    %77 = arith.subf %60, %76 : vector<8x128xf32>
    %78 = arith.subf %75, %69 : vector<8x1xf32>
    %cst_24 = arith.constant 1.000000e+00 : f32
    %79 = vector.broadcast %cst_24 : f32 to vector<8x1xf32>
    %80 = arith.divf %79, %78 : vector<8x1xf32>
    %81 = vector.broadcast %80 : vector<8x1xf32> to vector<8x128xf32>
    %82 = arith.mulf %77, %81 : vector<8x128xf32>
    %cst_25 = arith.constant 0xFF800000 : f32
    %83 = vector.shape_cast %63 : vector<1x128xi1> to vector<1x128xi1>
    %84 = vector.broadcast %83 : vector<1x128xi1> to vector<8x128xi1>
    %85 = vector.broadcast %cst_25 : f32 to vector<8x128xf32>
    %86 = arith.select %84, %82, %85 : vector<8x128xi1>, vector<8x128xf32>
    %cst_26 = arith.constant dense<0xFF800000> : vector<8xf32>
    %87 = vector.multi_reduction <maximumf>, %86, %cst_26 [1] : vector<8x128xf32> to vector<8xf32>
    %88 = vector.shape_cast %87 : vector<8xf32> to vector<8x1xf32>
    %89 = arith.minimumf %19, %88 : vector<8x1xf32>
    %cst_27 = arith.constant 9.99999996E-13 : f32
    %90 = vector.broadcast %cst_27 : f32 to vector<8x1xf32>
    %91 = arith.subf %89, %90 : vector<8x1xf32>
    %cst_28 = arith.constant 1.000000e+00 : f32
    %92 = vector.broadcast %cst_28 : f32 to vector<8x1xf32>
    %93 = arith.divf %92, %53 : vector<8x1xf32>
    %94 = vector.broadcast %91 : vector<8x1xf32> to vector<8x128xf32>
    %95 = arith.subf %82, %94 : vector<8x128xf32>
    %96 = math.absf %95 : vector<8x128xf32>
    %97 = math.log %96 : vector<8x128xf32>
    %98 = vector.broadcast %93 : vector<8x1xf32> to vector<8x128xf32>
    %99 = arith.mulf %98, %97 : vector<8x128xf32>
    %cst_29 = arith.constant -27.6310215 : f32
    %100 = vector.broadcast %cst_29 : f32 to vector<8x128xf32>
    %101 = arith.maximumf %99, %100 : vector<8x128xf32>
    %102 = vector.broadcast %57 : vector<8x1xf32> to vector<8x128xf32>
    %103 = arith.subf %102, %82 : vector<8x128xf32>
    %104 = math.absf %103 : vector<8x128xf32>
    %105 = math.log %104 : vector<8x128xf32>
    %106 = vector.broadcast %93 : vector<8x1xf32> to vector<8x128xf32>
    %107 = arith.mulf %106, %105 : vector<8x128xf32>
    %cst_30 = arith.constant -27.6310215 : f32
    %108 = vector.broadcast %cst_30 : f32 to vector<8x128xf32>
    %109 = arith.maximumf %107, %108 : vector<8x128xf32>
    %110 = arith.subf %109, %101 : vector<8x128xf32>
    %111 = math.exp %110 : vector<8x128xf32>
    %cst_31 = arith.constant 1.000000e+00 : f32
    %112 = vector.broadcast %cst_31 : f32 to vector<8x128xf32>
    %113 = arith.addf %112, %111 : vector<8x128xf32>
    %114 = math.log %113 : vector<8x128xf32>
    %cst_32 = arith.constant 0.000000e+00 : f32
    %115 = vector.broadcast %cst_32 : f32 to vector<8x128xf32>
    %116 = arith.subf %115, %114 : vector<8x128xf32>
    %117 = vector.broadcast %91 : vector<8x1xf32> to vector<8x128xf32>
    %118 = arith.cmpf olt, %82, %117 : vector<8x128xf32>
    %cst_33 = arith.constant 0xFF800000 : f32
    %119 = vector.broadcast %cst_33 : f32 to vector<8x128xf32>
    %120 = arith.select %118, %119, %116 : vector<8x128xi1>, vector<8x128xf32>
    %121 = vector.broadcast %57 : vector<8x1xf32> to vector<8x128xf32>
    %122 = arith.cmpf ogt, %82, %121 : vector<8x128xf32>
    %cst_34 = arith.constant 0.000000e+00 : f32
    %123 = vector.broadcast %cst_34 : f32 to vector<8x128xf32>
    %124 = arith.select %122, %123, %120 : vector<8x128xi1>, vector<8x128xf32>
    %125 = arith.addf %60, %124 : vector<8x128xf32>
    %c0_35 = arith.constant 0 : index
    %c0_36 = arith.constant 0 : index
    %126 = vector.load %arg5[%c0_35, %c0_36] : memref<8x128xf32, #tpu.memory_space<vmem>>, vector<8x128xf32>
    tpu.vector_store %arg5[%c0_35, %c0_36], %125 {strides = array<i32>} : memref<8x128xf32, #tpu.memory_space<vmem>>, vector<8x128xf32>,
    return
  }
  func.func @transform_0(%arg0: i32) -> (i32, i32) {
    %c0_i32 = arith.constant 0 : i32
    %c0_i32_0 = arith.constant 0 : i32
    return %arg0, %c0_i32 : i32, i32
  }
  func.func @transform_1(%arg0: i32) -> (i32, i32) {
    %c0_i32 = arith.constant 0 : i32
    %c0_i32_0 = arith.constant 0 : i32
    %c0_i32_1 = arith.constant 0 : i32
    return %c0_i32, %c0_i32_0 : i32, i32
  }
  func.func @transform_2(%arg0: i32) -> (i32, i32) {
    %c0_i32 = arith.constant 0 : i32
    %c0_i32_0 = arith.constant 0 : i32
    %c0_i32_1 = arith.constant 0 : i32
    return %c0_i32, %c0_i32_0 : i32, i32
  }
  func.func @transform_3(%arg0: i32) -> i32 {
    %c0_i32 = arith.constant 0 : i32
    %c0_i32_0 = arith.constant 0 : i32
    return %c0_i32 : i32
  }
  func.func @transform_4(%arg0: i32) -> (i32, i32) {
    %c0_i32 = arith.constant 0 : i32
    %c0_i32_0 = arith.constant 0 : i32
    return %arg0, %c0_i32 : i32, i32
  }
}

</mosaic_0001>

<llo_original>
// kernel: _pointwise_soft_mask.1
$region0: #{_pointwise_soft_mask.1}
  #allocation0 [shape = 'u32[]', space=smem, size = 0x4, offset = 0x4, fixed_abs, tag = 'smem constant byte address 0x4 - core index']
  #allocation1 [shape = 'u32[144,128]{1,0:T(1,128)}', space=vmem, size = 0x12000, scoped, tag = 'internal scratch']
  %s0 = inlined_call_operand.vmem [shape: f32[8,32], index: 0, kind: input, shape index: {}]
  %s1 = inlined_call_operand.vmem [shape: f32[32,128], index: 1, kind: input, shape index: {}]
  %s2 = inlined_call_operand.vmem [shape: f32[3,32], index: 2, kind: input, shape index: {}]
  %s3 = inlined_call_operand.vmem [shape: f32[3], index: 3, kind: input, shape index: {}]
  %s4 = inlined_call_operand.hbm [shape: f32[8,128], index: 4, kind: output, shape index: {}]
  %s5 = sld [smem:[#allocation0]]
  $region30: #{_pointwise_soft_mask.1} parent=0
    _
  %s7 = ssub.s32 1, %s5
  %s8 = scalar_select 0, %s7, %s5
  $region1: #{_pointwise_soft_mask.1} parent=0
    #allocation2 [shape = 'u8[512]{0}', space=smem, size = 0x200, scoped, tag = 'input window, operand 3, single buffered']
    #allocation3 [shape = 's32[1]{0}', space=sflag, size = 0x4, scoped, tag = 'scoped memory for _pointwise_soft_mask.1']
    #allocation4 [shape = 's32[1]{0}', space=sflag, size = 0x4, scoped, tag = 'scoped memory for _pointwise_soft_mask.1']
    #allocation5 [shape = 'u8[4096]{0}', space=vmem, size = 0x1000, scoped, tag = 'output window, operand 0, single buffered']
    %9 = vsyncpa [#allocation4], 0
    %10 = vsyncpa [#allocation3], 0
    // Predicated region
    $region2: #{_pointwise_soft_mask.1} parent=1 // pred_check
      _
    $region3: #{_pointwise_soft_mask.1} parent=1 // pred_check_branch
      %12 = sbr.rel (0) target = $region5
    $region4: #{_pointwise_soft_mask.1} parent=1 // pred_region
      _
    $region5: #{_pointwise_soft_mask.1} parent=1 // pred_fallthru
      _
    // Predicated region
    $region6: #{_pointwise_soft_mask.1} parent=1 // pred_check
      _
    $region7: #{_pointwise_soft_mask.1} parent=1 // pred_check_branch
      %14 = sbr.rel (0) target = $region9
    $region8: #{_pointwise_soft_mask.1} parent=1 // pred_region
      _
    $region9: #{_pointwise_soft_mask.1} parent=1 // pred_fallthru
      _
    // Predicated region
    $region10: #{_pointwise_soft_mask.1} parent=1 // pred_check
      _
    $region11: #{_pointwise_soft_mask.1} parent=1 // pred_check_branch
      %16 = sbr.rel (0) target = $region13
    $region12: #{_pointwise_soft_mask.1} parent=1 // pred_region
      _
    $region13: #{_pointwise_soft_mask.1} parent=1 // pred_fallthru
      _
    // Predicated region
    $region14: #{_pointwise_soft_mask.1} parent=1 // pred_check
      _
    $region15: #{_pointwise_soft_mask.1} parent=1 // pred_check_branch
      %18 = sbr.rel (0) target = $region17
    $region16: #{_pointwise_soft_mask.1} parent=1 // pred_region
      %s20 = ssub.s32 16, 16
      %21 = vsyncadd [#allocation4], %s20
      %s23 = sshll.u32 %s3, 4
      %s24 = int_to_ptr.vmem [resolvable:$true] %s23
      %26 = dma.vmem_to_smem %s24, 16, [#allocation2], [#allocation4]
    $region17: #{_pointwise_soft_mask.1} parent=1 // pred_fallthru
      _
    // Predicated region
    $region18: #{_pointwise_soft_mask.1} parent=1 // pred_check
      _
    $region19: #{_pointwise_soft_mask.1} parent=1 // pred_check_branch
      %28 = sbr.rel (0) target = $region21
    $region20: #{_pointwise_soft_mask.1} parent=1 // pred_region
      %29 = dma.done [#allocation4], 16
    $region21: #{_pointwise_soft_mask.1} parent=1 // pred_fallthru
      _
    %30 = sfence
    %v31 = vld [vmem:[%s0] sm:$0xff]
    %v32 = vld [vmem:[%s1] sm:$0xff]
    %v33 = vld [vmem:[%s1 + $0x8] sm:$0xff]
    %v34 = vld [vmem:[%s1 + $0x10] sm:$0xff]
    %v35 = vld [vmem:[%s1 + $0x18] sm:$0xff]
    %v36 = vld [vmem:[%s2] sm:$0x7]
    %v37 = vlaneseq
    %v38 = vshrl.u32 %v37, 7
    %v39 = vsub.s32 0, %v38
    %v40 = vrot.slane %v36, %v39
    %v41 = vmul.f32 %v31, %v40
    %vm42 = vcmask 261120
    %v43 = vsel %vm42, %v41, 0.0
    %44 = vadd.xlane.f32.xlu0 %v43
    %v45 = vpop.xlane.xlu0 %44
    %s46 = sld [smem:[#allocation2]]
    %v47 = vstv %s46
    %v48 = vadd.f32 %v45, %v47
    %v49 = vxor.u32 %v48, 2147483648
    %v50 = vmul.f32 %v49, 1.442695
    %v51 = vpow.pop %v50
    %v52 = vadd.f32 %v51, 1.0
    %v53 = vrcp.pop %v52
    %v54 = vmul.f32 1.0, %v53
    %v55 = vmax.f32 %v54, 1e-12
    %v56 = vmin.f32 %v55, 1.0
    %v57 = vlaneseq
    %v58 = vshrl.u32 %v57, 7
    %v59 = vsub.s32 1, %v58
    %v60 = vrot.slane %v36, %v59
    %v61 = vmul.f32 %v31, %v60
    %v62 = vsel %vm42, %v61, 0.0
    %63 = vadd.xlane.f32.xlu0 %v62
    %v64 = vpop.xlane.xlu0 %63
    %s65 = sld [smem:[#allocation2 + $0x1]]
    %v66 = vstv %s65
    %v67 = vadd.f32 %v64, %v66
    %v68 = vxor.u32 %v67, 2147483648
    %v69 = vmul.f32 %v68, 1.442695
    %v70 = vpow.pop %v69
    %v71 = vadd.f32 %v70, 1.0
    %v72 = vrcp.pop %v71
    %v73 = vmul.f32 1.0, %v72
    %v74 = vmax.f32 %v73, 1e-12
    %v75 = vmin.f32 %v74, 1.0
    %v76 = vlaneseq
    %v77 = vshrl.u32 %v76, 7
    %v78 = vsub.s32 2, %v77
    %v79 = vrot.slane %v36, %v78
    %v80 = vmul.f32 %v31, %v79
    %v81 = vsel %vm42, %v80, 0.0
    %82 = vadd.xlane.f32.xlu0 %v81
    %v83 = vpop.xlane.xlu0 %82
    %s84 = sld [smem:[#allocation2 + $0x2]]
    %v85 = vstv %s84
    %v86 = vadd.f32 %v83, %v85
    %v87 = vxor.u32 %v86, 2147483648
    %v88 = vmul.f32 %v87, 1.442695
    %v89 = vpow.pop %v88
    %v90 = vadd.f32 %v89, 1.0
    %v91 = vrcp.pop %v90
    %v92 = vmul.f32 1.0, %v91
    %v93 = vmax.f32 %v92, 1e-12
    %v94 = vmin.f32 %v93, 1.0
    %v95 = vsub.f32 1.0, %v56
    %v96 = vmul.f32 %v75, %v95
    %v97 = vadd.f32 %v56, %v96
    %v99 = vsel %vm42, %v31, 0
    %101 = vmatprep.subr.mxu0 0.0
    %102 = vmatpush1.msra.mxu0 %v32
    %103 = vmatprep.subr.mxu0 0.0
    %104 = vmatpush1.msra.mxu0 %v33
    %105 = vmatprep.subr.mxu0 0.0
    %106 = vmatpush1.msra.mxu0 %v34
    %107 = vmatprep.subr.mxu0 0.0
    %108 = vmatpush1.msra.mxu0 %v35
    %109 = vmatprep.subr.mxu0 0.0
    %110 = vmatpush1.msra.mxu0 0.0
    %111 = vmatprep.subr.mxu0 0.0
    %112 = vmatpush1.msra.mxu0 0.0
    %113 = vmatprep.subr.mxu0 0.0
    %114 = vmatpush1.msra.mxu0 0.0
    %115 = vmatprep.subr.mxu0 0.0
    %116 = vmatpush1.msra.mxu0 0.0
    %117 = vmatprep.subr.mxu0 0.0
    %118 = vmatpush1.msra.mxu0 0.0
    %119 = vmatprep.subr.mxu0 0.0
    %120 = vmatpush1.msra.mxu0 0.0
    %121 = vmatprep.subr.mxu0 0.0
    %122 = vmatpush1.msra.mxu0 0.0
    %123 = vmatprep.subr.mxu0 0.0
    %124 = vmatpush1.msra.mxu0 0.0
    %125 = vmatprep.subr.mxu0 0.0
    %126 = vmatpush1.msra.mxu0 0.0
    %127 = vmatprep.subr.mxu0 0.0
    %128 = vmatpush1.msra.mxu0 0.0
    %129 = vmatprep.subr.mxu0 0.0
    %130 = vmatpush1.msra.mxu0 0.0
    %131 = vmatprep.subr.mxu0 0.0
    %132 = vmatpush1.msra.mxu0 0.0
    %133 = vmatprep.subr.mxu0 0.0
    %134 = vmatpush1.msra.mxu0 0.0
    %135 = vmatprep.subr.mxu0 0.0
    %136 = vmatpush1.msra.mxu0 0.0
    %137 = vmatprep.subr.mxu0 0.0
    %138 = vmatpush1.msra.mxu0 0.0
    %139 = vmatprep.subr.mxu0 0.0
    %140 = vmatpush1.msra.mxu0 0.0
    %141 = vmatprep.subr.mxu0 0.0
    %142 = vmatpush1.msra.mxu0 0.0
    %143 = vmatprep.subr.mxu0 0.0
    %144 = vmatpush1.msra.mxu0 0.0
    %145 = vmatprep.subr.mxu0 0.0
    %146 = vmatpush1.msra.mxu0 0.0
    %147 = vmatprep.subr.mxu0 0.0
    %148 = vmatpush1.msra.mxu0 0.0
    %149 = vmatprep.subr.mxu0 0.0
    %150 = vmatpush1.msra.mxu0 0.0
    %151 = vmatprep.subr.mxu0 0.0
    %152 = vmatpush1.msra.mxu0 0.0
    %153 = vmatprep.subr.mxu0 0.0
    %154 = vmatpush1.msra.mxu0 0.0
    %155 = vmatprep.subr.mxu0 0.0
    %156 = vmatpush1.msra.mxu0 0.0
    %157 = vmatprep.subr.mxu0 0.0
    %158 = vmatpush1.msra.mxu0 0.0
    %159 = vmatprep.subr.mxu0 0.0
    %160 = vmatpush1.msra.mxu0 0.0
    %161 = vmatprep.subr.mxu0 0.0
    %162 = vmatpush1.msra.mxu0 0.0
    %163 = vmatprep.subr.mxu0 0.0
    %164 = vmatpush1.msra.mxu0 0.0
    %165 = vmatprep.mubr.f32.mxu0 0.0
    %166 = vmatmul.mubr.f32.gmra.mrb[0].mxu0 %v99
    %v167 = vpop.f32.mrb[0].mxu0
    %v168 = vadd.f32 0.0, %v167
    %v169 = vpop.f32.mrb[0].mxu0
    %170 = vdwg.mxu0
    %v171 = vmul.f32 %v168, 0.03125
    %v172 = vlaneseq
    %v173 = vand.u32 %v172, 127
    %vm174 = vcmp.lt.s32.totalorder %v173, 8
    %v175 = vsel %vm174, 1, 0
    %vm176 = vcmp.eq.s32.totalorder %v175, 1
    %v177 = vsel %vm176, %v171, inf
    %178 = vmin.xlane.f32.xlu0 %v177
    %v179 = vpop.xlane.xlu0 %178
    %v180 = vsel %vm176, %v171, -inf
    %181 = vmax.xlane.f32.xlu0 %v180
    %v182 = vpop.xlane.xlu0 %181
    %v183 = vsub.f32 %v171, %v179
    %v184 = vsub.f32 %v182, %v179
    %v185 = vrcp.pop %v184
    %v186 = vmul.f32 1.0, %v185
    %v187 = vmul.f32 %v183, %v186
    %v188 = vsel %vm176, %v187, -inf
    %189 = vmax.xlane.f32.xlu0 %v188
    %v190 = vpop.xlane.xlu0 %189
    %v191 = vmin.f32 %v56, %v190
    %v192 = vsub.f32 %v191, 1e-12
    %v193 = vrcp.pop %v94
    %v194 = vmul.f32 1.0, %v193
    %v195 = vsub.f32 %v187, %v192
    %v196 = vand.u32 2147483647, %v195
    %v197 = vlog2.pop %v196
    %v198 = vmul.f32 %v197, 0.6931472
    %v199 = vmul.f32 %v194, %v198
    %v200 = vmax.f32 %v199, -27.631021
    %v201 = vsub.f32 %v97, %v187
    %v202 = vand.u32 2147483647, %v201
    %v203 = vlog2.pop %v202
    %v204 = vmul.f32 %v203, 0.6931472
    %v205 = vmul.f32 %v194, %v204
    %v206 = vmax.f32 %v205, -27.631021
    %v207 = vsub.f32 %v206, %v200
    %v208 = vmul.f32 %v207, 1.442695
    %v209 = vpow.pop %v208
    %v210 = vadd.f32 %v209, 1.0
    %v211 = vlog2.pop %v210
    %v212 = vmul.f32 %v211, 0.6931472
    %v213 = vsub.f32 0.0, %v212
    %vm214 = vcmp.lt.f32.partialorder %v187, %v192
    %v215 = vsel %vm214, -inf, %v213
    %vm216 = vcmp.gt.f32.partialorder %v187, %v97
    %v217 = vsel %vm216, 0.0, %v215
    %v218 = vadd.f32 %v171, %v217
    %219 = vst [vmem:[#allocation5] sm:$0xff] %v218
    // Predicated region
    $region22: #{_pointwise_soft_mask.1} parent=1 // pred_check
      _
    $region23: #{_pointwise_soft_mask.1} parent=1 // pred_check_branch
      %221 = sbr.rel (0) target = $region25
    $region24: #{_pointwise_soft_mask.1} parent=1 // pred_region
      %s223 = ssub.s32 128, 128
      %224 = vsyncadd [#allocation3], %s223
      %s226 = sshll.u32 [#allocation5], 4
      %s227 = int_to_ptr.vmem [resolvable:$true] %s226
      %229 = dma.vmem_to_hbm [thread:$0]  %s227, 128, %s4, [#allocation3]
    $region25: #{_pointwise_soft_mask.1} parent=1 // pred_fallthru
      _
    // Predicated region
    $region26: #{_pointwise_soft_mask.1} parent=1 // pred_check
      _
    $region27: #{_pointwise_soft_mask.1} parent=1 // pred_check_branch
      %231 = sbr.rel (0) target = $region29
    $region28: #{_pointwise_soft_mask.1} parent=1 // pred_region
      %232 = dma.done [#allocation3], 128
    $region29: #{_pointwise_soft_mask.1} parent=1 // pred_fallthru
      _
    %233 = vsyncpa [#allocation3], 1
    %234 = vsyncpa [#allocation4], 1

// kernel: _pointwise_soft_mask.1
$region0: #{_pointwise_soft_mask.1}
  #allocation0 [shape = 'u32[]', space=smem, size = 0x4, offset = 0x4, fixed_abs, tag = 'smem constant byte address 0x4 - core index']
  #allocation1 [shape = 'u32[144,128]{1,0:T(1,128)}', space=vmem, size = 0x12000, scoped, tag = 'internal scratch']
  %s0 = inlined_call_operand.vmem [shape: f32[8,32], index: 0, kind: input, shape index: {}]
  %s1 = inlined_call_operand.vmem [shape: f32[32,128], index: 1, kind: input, shape index: {}]
  %s2 = inlined_call_operand.vmem [shape: f32[3,32], index: 2, kind: input, shape index: {}]
  %s3 = inlined_call_operand.vmem [shape: f32[3], index: 3, kind: input, shape index: {}]
  %s4 = inlined_call_operand.hbm [shape: f32[8,128], index: 4, kind: output, shape index: {}]
  %s5 = sld [smem:[#allocation0]]
  $region30: #{_pointwise_soft_mask.1} parent=0
    _
  %s7 = ssub.s32 1, %s5
  %s8 = scalar_select 0, %s7, %s5
  $region1: #{_pointwise_soft_mask.1} parent=0
    #allocation2 [shape = 'u8[512]{0}', space=smem, size = 0x200, scoped, tag = 'input window, operand 3, single buffered']
    #allocation3 [shape = 's32[1]{0}', space=sflag, size = 0x4, scoped, tag = 'scoped memory for _pointwise_soft_mask.1']
    #allocation4 [shape = 's32[1]{0}', space=sflag, size = 0x4, scoped, tag = 'scoped memory for _pointwise_soft_mask.1']
    #allocation5 [shape = 'u8[4096]{0}', space=vmem, size = 0x1000, scoped, tag = 'output window, operand 0, single buffered']
    %9 = vsyncpa [#allocation4], 0
    %10 = vsyncpa [#allocation3], 0
    // Predicated region
    $region2: #{_pointwise_soft_mask.1} parent=1 // pred_check
      _
    $region3: #{_pointwise_soft_mask.1} parent=1 // pred_check_branch
      %12 = sbr.rel (0) target = $region5
    $region4: #{_pointwise_soft_mask.1} parent=1 // pred_region
      _
    $region5: #{_pointwise_soft_mask.1} parent=1 // pred_fallthru
      _
    // Predicated region
    $region6: #{_pointwise_soft_mask.1} parent=1 // pred_check
      _
    $region7: #{_pointwise_soft_mask.1} parent=1 // pred_check_branch
      %14 = sbr.rel (0) target = $region9
    $region8: #{_pointwise_soft_mask.1} parent=1 // pred_region
      _
    $region9: #{_pointwise_soft_mask.1} parent=1 // pred_fallthru
      _
    // Predicated region
    $region10: #{_pointwise_soft_mask.1} parent=1 // pred_check
      _
    $region11: #{_pointwise_soft_mask.1} parent=1 // pred_check_branch
      %16 = sbr.rel (0) target = $region13
    $region12: #{_pointwise_soft_mask.1} parent=1 // pred_region
      _
    $region13: #{_pointwise_soft_mask.1} parent=1 // pred_fallthru
      _
    // Predicated region
    $region14: #{_pointwise_soft_mask.1} parent=1 // pred_check
      _
    $region15: #{_pointwise_soft_mask.1} parent=1 // pred_check_branch
      %18 = sbr.rel (0) target = $region17
    $region16: #{_pointwise_soft_mask.1} parent=1 // pred_region
      %s20 = ssub.s32 16, 16
      %21 = vsyncadd [#allocation4], %s20
      %s23 = sshll.u32 %s3, 4
      %s24 = int_to_ptr.vmem [resolvable:$true] %s23
      %26 = dma.vmem_to_smem %s24, 16, [#allocation2], [#allocation4]
    $region17: #{_pointwise_soft_mask.1} parent=1 // pred_fallthru
      _
    // Predicated region
    $region18: #{_pointwise_soft_mask.1} parent=1 // pred_check
      _
    $region19: #{_pointwise_soft_mask.1} parent=1 // pred_check_branch
      %28 = sbr.rel (0) target = $region21
    $region20: #{_pointwise_soft_mask.1} parent=1 // pred_region
      %29 = dma.done [#allocation4], 16
    $region21: #{_pointwise_soft_mask.1} parent=1 // pred_fallthru
      _
    %30 = sfence
    %v31 = vld [vmem:[%s0] sm:$0xff]
    %v32 = vld [vmem:[%s1] sm:$0xff]
    %v33 = vld [vmem:[%s1 + $0x8] sm:$0xff]
    %v34 = vld [vmem:[%s1 + $0x10] sm:$0xff]
    %v35 = vld [vmem:[%s1 + $0x18] sm:$0xff]
    %v36 = vld [vmem:[%s2] sm:$0x7]
    %v37 = vlaneseq
    %v38 = vshrl.u32 %v37, 7
    %v39 = vsub.s32 0, %v38
    %v40 = vrot.slane %v36, %v39
    %v41 = vmul.f32 %v31, %v40
    %vm42 = vcmask 261120
    %v43 = vsel %vm42, %v41, 0.0
    %44 = vadd.xlane.f32.xlu0 %v43
    %v45 = vpop.xlane.xlu0 %44
    %s46 = sld [smem:[#allocation2]]
    %v47 = vstv %s46
    %v48 = vadd.f32 %v45, %v47
    %v49 = vxor.u32 %v48, 2147483648
    %v50 = vmul.f32 %v49, 1.442695
    %v51 = vpow.pop %v50
    %v52 = vadd.f32 %v51, 1.0
    %v53 = vrcp.pop %v52
    %v54 = vmul.f32 1.0, %v53
    %v55 = vmax.f32 %v54, 1e-12
    %v56 = vmin.f32 %v55, 1.0
    %v57 = vlaneseq
    %v58 = vshrl.u32 %v57, 7
    %v59 = vsub.s32 1, %v58
    %v60 = vrot.slane %v36, %v59
    %v61 = vmul.f32 %v31, %v60
    %v62 = vsel %vm42, %v61, 0.0
    %63 = vadd.xlane.f32.xlu0 %v62
    %v64 = vpop.xlane.xlu0 %63
    %s65 = sld [smem:[#allocation2 + $0x1]]
    %v66 = vstv %s65
    %v67 = vadd.f32 %v64, %v66
    %v68 = vxor.u32 %v67, 2147483648
    %v69 = vmul.f32 %v68, 1.442695
    %v70 = vpow.pop %v69
    %v71 = vadd.f32 %v70, 1.0
    %v72 = vrcp.pop %v71
    %v73 = vmul.f32 1.0, %v72
    %v74 = vmax.f32 %v73, 1e-12
    %v75 = vmin.f32 %v74, 1.0
    %v76 = vlaneseq
    %v77 = vshrl.u32 %v76, 7
    %v78 = vsub.s32 2, %v77
    %v79 = vrot.slane %v36, %v78
    %v80 = vmul.f32 %v31, %v79
    %v81 = vsel %vm42, %v80, 0.0
    %82 = vadd.xlane.f32.xlu0 %v81
    %v83 = vpop.xlane.xlu0 %82
    %s84 = sld [smem:[#allocation2 + $0x2]]
    %v85 = vstv %s84
    %v86 = vadd.f32 %v83, %v85
    %v87 = vxor.u32 %v86, 2147483648
    %v88 = vmul.f32 %v87, 1.442695
    %v89 = vpow.pop %v88
    %v90 = vadd.f32 %v89, 1.0
    %v91 = vrcp.pop %v90
    %v92 = vmul.f32 1.0, %v91
    %v93 = vmax.f32 %v92, 1e-12
    %v94 = vmin.f32 %v93, 1.0
    %v95 = vsub.f32 1.0, %v56
    %v96 = vmul.f32 %v75, %v95
    %v97 = vadd.f32 %v56, %v96
    %v99 = vsel %vm42, %v31, 0
    %101 = vmatprep.subr.mxu0 0.0
    %102 = vmatpush1.msra.mxu0 %v32
    %103 = vmatprep.subr.mxu0 0.0
    %104 = vmatpush1.msra.mxu0 %v33
    %105 = vmatprep.subr.mxu0 0.0
    %106 = vmatpush1.msra.mxu0 %v34
    %107 = vmatprep.subr.mxu0 0.0
    %108 = vmatpush1.msra.mxu0 %v35
    %109 = vmatprep.subr.mxu0 0.0
    %110 = vmatpush1.msra.mxu0 0.0
    %111 = vmatprep.subr.mxu0 0.0
    %112 = vmatpush1.msra.mxu0 0.0
    %113 = vmatprep.subr.mxu0 0.0
    %114 = vmatpush1.msra.mxu0 0.0
    %115 = vmatprep.subr.mxu0 0.0
    %116 = vmatpush1.msra.mxu0 0.0
    %117 = vmatprep.subr.mxu0 0.0
    %118 = vmatpush1.msra.mxu0 0.0
    %119 = vmatprep.subr.mxu0 0.0
    %120 = vmatpush1.msra.mxu0 0.0
    %121 = vmatprep.subr.mxu0 0.0
    %122 = vmatpush1.msra.mxu0 0.0
    %123 = vmatprep.subr.mxu0 0.0
    %124 = vmatpush1.msra.mxu0 0.0
    %125 = vmatprep.subr.mxu0 0.0
    %126 = vmatpush1.msra.mxu0 0.0
    %127 = vmatprep.subr.mxu0 0.0
    %128 = vmatpush1.msra.mxu0 0.0
    %129 = vmatprep.subr.mxu0 0.0
    %130 = vmatpush1.msra.mxu0 0.0
    %131 = vmatprep.subr.mxu0 0.0
    %132 = vmatpush1.msra.mxu0 0.0
    %133 = vmatprep.subr.mxu0 0.0
    %134 = vmatpush1.msra.mxu0 0.0
    %135 = vmatprep.subr.mxu0 0.0
    %136 = vmatpush1.msra.mxu0 0.0
    %137 = vmatprep.subr.mxu0 0.0
    %138 = vmatpush1.msra.mxu0 0.0
    %139 = vmatprep.subr.mxu0 0.0
    %140 = vmatpush1.msra.mxu0 0.0
    %141 = vmatprep.subr.mxu0 0.0
    %142 = vmatpush1.msra.mxu0 0.0
    %143 = vmatprep.subr.mxu0 0.0
    %144 = vmatpush1.msra.mxu0 0.0
    %145 = vmatprep.subr.mxu0 0.0
    %146 = vmatpush1.msra.mxu0 0.0
    %147 = vmatprep.subr.mxu0 0.0
    %148 = vmatpush1.msra.mxu0 0.0
    %149 = vmatprep.subr.mxu0 0.0
    %150 = vmatpush1.msra.mxu0 0.0
    %151 = vmatprep.subr.mxu0 0.0
    %152 = vmatpush1.msra.mxu0 0.0
    %153 = vmatprep.subr.mxu0 0.0
    %154 = vmatpush1.msra.mxu0 0.0
    %155 = vmatprep.subr.mxu0 0.0
    %156 = vmatpush1.msra.mxu0 0.0
    %157 = vmatprep.subr.mxu0 0.0
    %158 = vmatpush1.msra.mxu0 0.0
    %159 = vmatprep.subr.mxu0 0.0
    %160 = vmatpush1.msra.mxu0 0.0
    %161 = vmatprep.subr.mxu0 0.0
    %162 = vmatpush1.msra.mxu0 0.0
    %163 = vmatprep.subr.mxu0 0.0
    %164 = vmatpush1.msra.mxu0 0.0
    %165 = vmatprep.mubr.f32.mxu0 0.0
    %166 = vmatmul.mubr.f32.gmra.mrb[0].mxu0 %v99
    %v167 = vpop.f32.mrb[0].mxu0
    %v168 = vadd.f32 0.0, %v167
    %v169 = vpop.f32.mrb[0].mxu0
    %170 = vdwg.mxu0
    %v171 = vmul.f32 %v168, 0.03125
    %v172 = vlaneseq
    %v173 = vand.u32 %v172, 127
    %vm174 = vcmp.lt.s32.totalorder %v173, 8
    %v175 = vsel %vm174, 1, 0
    %vm176 = vcmp.eq.s32.totalorder %v175, 1
    %v177 = vsel %vm176, %v171, inf
    %178 = vmin.xlane.f32.xlu0 %v177
    %v179 = vpop.xlane.xlu0 %178
    %v180 = vsel %vm176, %v171, -inf
    %181 = vmax.xlane.f32.xlu0 %v180
    %v182 = vpop.xlane.xlu0 %181
    %v183 = vsub.f32 %v171, %v179
    %v184 = vsub.f32 %v182, %v179
    %v185 = vrcp.pop %v184
    %v186 = vmul.f32 1.0, %v185
    %v187 = vmul.f32 %v183, %v186
    %v188 = vsel %vm176, %v187, -inf
    %189 = vmax.xlane.f32.xlu0 %v188
    %v190 = vpop.xlane.xlu0 %189
    %v191 = vmin.f32 %v56, %v190
    %v192 = vsub.f32 %v191, 1e-12
    %v193 = vrcp.pop %v94
    %v194 = vmul.f32 1.0, %v193
    %v195 = vsub.f32 %v187, %v192
    %v196 = vand.u32 2147483647, %v195
    %v197 = vlog2.pop %v196
    %v198 = vmul.f32 %v197, 0.6931472
    %v199 = vmul.f32 %v194, %v198
    %v200 = vmax.f32 %v199, -27.631021
    %v201 = vsub.f32 %v97, %v187
    %v202 = vand.u32 2147483647, %v201
    %v203 = vlog2.pop %v202
    %v204 = vmul.f32 %v203, 0.6931472
    %v205 = vmul.f32 %v194, %v204
    %v206 = vmax.f32 %v205, -27.631021
    %v207 = vsub.f32 %v206, %v200
    %v208 = vmul.f32 %v207, 1.442695
    %v209 = vpow.pop %v208
    %v210 = vadd.f32 %v209, 1.0
    %v211 = vlog2.pop %v210
    %v212 = vmul.f32 %v211, 0.6931472
    %v213 = vsub.f32 0.0, %v212
    %vm214 = vcmp.lt.f32.partialorder %v187, %v192
    %v215 = vsel %vm214, -inf, %v213
    %vm216 = vcmp.gt.f32.partialorder %v187, %v97
    %v217 = vsel %vm216, 0.0, %v215
    %v218 = vadd.f32 %v171, %v217
    %219 = vst [vmem:[#allocation5] sm:$0xff] %v218
    // Predicated region
    $region22: #{_pointwise_soft_mask.1} parent=1 // pred_check
      _
    $region23: #{_pointwise_soft_mask.1} parent=1 // pred_check_branch
      %221 = sbr.rel (0) target = $region25
    $region24: #{_pointwise_soft_mask.1} parent=1 // pred_region
      %s223 = ssub.s32 128, 128
      %224 = vsyncadd [#allocation3], %s223
      %s226 = sshll.u32 [#allocation5], 4
      %s227 = int_to_ptr.vmem [resolvable:$true] %s226
      %229 = dma.vmem_to_hbm [thread:$0]  %s227, 128, %s4, [#allocation3]
    $region25: #{_pointwise_soft_mask.1} parent=1 // pred_fallthru
      _
    // Predicated region
    $region26: #{_pointwise_soft_mask.1} parent=1 // pred_check
      _
    $region27: #{_pointwise_soft_mask.1} parent=1 // pred_check_branch
      %231 = sbr.rel (0) target = $region29
    $region28: #{_pointwise_soft_mask.1} parent=1 // pred_region
      %232 = dma.done [#allocation3], 128
    $region29: #{_pointwise_soft_mask.1} parent=1 // pred_fallthru
      _
    %233 = vsyncpa [#allocation3], 1
    %234 = vsyncpa [#allocation4], 1

// kernel: _pointwise_soft_mask.1
$region0: #{_pointwise_soft_mask.1}
  #allocation0 [shape = 'u32[]', space=smem, size = 0x4, offset = 0x4, fixed_abs, tag = 'smem constant byte address 0x4 - core index']
  #allocation1 [shape = 'u32[144,128]{1,0:T(1,128)}', space=vmem, size = 0x12000, scoped, tag = 'internal scratch']
  %s0 = inlined_call_operand.vmem [shape: f32[8,32], index: 0, kind: input, shape index: {}]
  %s1 = inlined_call_operand.vmem [shape: f32[32,128], index: 1, kind: input, shape index: {}]
  %s2 = inlined_call_operand.vmem [shape: f32[3,32], index: 2, kind: input, shape index: {}]
  %s3 = inlined_call_operand.vmem [shape: f32[3], index: 3, kind: input, shape index: {}]
  %s4 = inlined_call_operand.hbm [shape: f32[8,128], index: 4, kind: output, shape index: {}]
  %s5 = sld [smem:[#allocation0]]
  $region30: #{_pointwise_soft_mask.1} parent=0
    _
  %s7 = ssub.s32 1, %s5
  %s8 = scalar_select 0, %s7, %s5
  $region1: #{_pointwise_soft_mask.1} parent=0
    #allocation2 [shape = 'u8[512]{0}', space=smem, size = 0x200, scoped, tag = 'input window, operand 3, single buffered']
    #allocation3 [shape = 's32[1]{0}', space=sflag, size = 0x4, scoped, tag = 'scoped memory for _pointwise_soft_mask.1']
    #allocation4 [shape = 's32[1]{0}', space=sflag, size = 0x4, scoped, tag = 'scoped memory for _pointwise_soft_mask.1']
    #allocation5 [shape = 'u8[4096]{0}', space=vmem, size = 0x1000, scoped, tag = 'output window, operand 0, single buffered']
    %9 = vsyncpa [#allocation4], 0
    %10 = vsyncpa [#allocation3], 0
    // Predicated region
    $region2: #{_pointwise_soft_mask.1} parent=1 // pred_check
      _
    $region3: #{_pointwise_soft_mask.1} parent=1 // pred_check_branch
      %12 = sbr.rel (0) target = $region5
    $region4: #{_pointwise_soft_mask.1} parent=1 // pred_region
      _
    $region5: #{_pointwise_soft_mask.1} parent=1 // pred_fallthru
      _
    // Predicated region
    $region6: #{_pointwise_soft_mask.1} parent=1 // pred_check
      _
    $region7: #{_pointwise_soft_mask.1} parent=1 // pred_check_branch
      %14 = sbr.rel (0) target = $region9
    $region8: #{_pointwise_soft_mask.1} parent=1 // pred_region
      _
    $region9: #{_pointwise_soft_mask.1} parent=1 // pred_fallthru
      _
    // Predicated region
    $region10: #{_pointwise_soft_mask.1} parent=1 // pred_check
      _
    $region11: #{_pointwise_soft_mask.1} parent=1 // pred_check_branch
      %16 = sbr.rel (0) target = $region13
    $region12: #{_pointwise_soft_mask.1} parent=1 // pred_region
      _
    $region13: #{_pointwise_soft_mask.1} parent=1 // pred_fallthru
      _
    // Predicated region
    $region14: #{_pointwise_soft_mask.1} parent=1 // pred_check
      _
    $region15: #{_pointwise_soft_mask.1} parent=1 // pred_check_branch
      %18 = sbr.rel (0) target = $region17
    $region16: #{_pointwise_soft_mask.1} parent=1 // pred_region
      %s20 = ssub.s32 16, 16
      %21 = vsyncadd [#allocation4], %s20
      %s23 = sshll.u32 %s3, 4
      %s24 = int_to_ptr.vmem [resolvable:$true] %s23
      %26 = dma.vmem_to_smem %s24, 16, [#allocation2], [#allocation4]
    $region17: #{_pointwise_soft_mask.1} parent=1 // pred_fallthru
      _
    // Predicated region
    $region18: #{_pointwise_soft_mask.1} parent=1 // pred_check
      _
    $region19: #{_pointwise_soft_mask.1} parent=1 // pred_check_branch
      %28 = sbr.rel (0) target = $region21
    $region20: #{_pointwise_soft_mask.1} parent=1 // pred_region
      %29 = dma.done [#allocation4], 16
    $region21: #{_pointwise_soft_mask.1} parent=1 // pred_fallthru
      _
    %30 = sfence
    %v31 = vld [vmem:[%s0] sm:$0xff]
    %v32 = vld [vmem:[%s1] sm:$0xff]
    %v33 = vld [vmem:[%s1 + $0x8] sm:$0xff]
    %v34 = vld [vmem:[%s1 + $0x10] sm:$0xff]
    %v35 = vld [vmem:[%s1 + $0x18] sm:$0xff]
    %v36 = vld [vmem:[%s2] sm:$0x7]
    %v37 = vlaneseq
    %v38 = vshrl.u32 %v37, 7
    %v39 = vsub.s32 0, %v38
    %v40 = vrot.slane %v36, %v39
    %v41 = vmul.f32 %v31, %v40
    %vm42 = vcmask 261120
    %v43 = vsel %vm42, %v41, 0.0
    %44 = vadd.xlane.f32.xlu0 %v43
    %v45 = vpop.xlane.xlu0 %44
    %s46 = sld [smem:[#allocation2]]
    %v47 = vstv %s46
    %v48 = vadd.f32 %v45, %v47
    %v49 = vxor.u32 %v48, 2147483648
    %v50 = vmul.f32 %v49, 1.442695
    %v51 = vpow.pop %v50
    %v52 = vadd.f32 %v51, 1.0
    %v53 = vrcp.pop %v52
    %v54 = vmul.f32 1.0, %v53
    %v55 = vmax.f32 %v54, 1e-12
    %v56 = vmin.f32 %v55, 1.0
    %v57 = vlaneseq
    %v58 = vshrl.u32 %v57, 7
    %v59 = vsub.s32 1, %v58
    %v60 = vrot.slane %v36, %v59
    %v61 = vmul.f32 %v31, %v60
    %v62 = vsel %vm42, %v61, 0.0
    %63 = vadd.xlane.f32.xlu0 %v62
    %v64 = vpop.xlane.xlu0 %63
    %s65 = sld [smem:[#allocation2 + $0x1]]
    %v66 = vstv %s65
    %v67 = vadd.f32 %v64, %v66
    %v68 = vxor.u32 %v67, 2147483648
    %v69 = vmul.f32 %v68, 1.442695
    %v70 = vpow.pop %v69
    %v71 = vadd.f32 %v70, 1.0
    %v72 = vrcp.pop %v71
    %v73 = vmul.f32 1.0, %v72
    %v74 = vmax.f32 %v73, 1e-12
    %v75 = vmin.f32 %v74, 1.0
    %v76 = vlaneseq
    %v77 = vshrl.u32 %v76, 7
    %v78 = vsub.s32 2, %v77
    %v79 = vrot.slane %v36, %v78
    %v80 = vmul.f32 %v31, %v79
    %v81 = vsel %vm42, %v80, 0.0
    %82 = vadd.xlane.f32.xlu0 %v81
    %v83 = vpop.xlane.xlu0 %82
    %s84 = sld [smem:[#allocation2 + $0x2]]
    %v85 = vstv %s84
    %v86 = vadd.f32 %v83, %v85
    %v87 = vxor.u32 %v86, 2147483648
    %v88 = vmul.f32 %v87, 1.442695
    %v89 = vpow.pop %v88
    %v90 = vadd.f32 %v89, 1.0
    %v91 = vrcp.pop %v90
    %v92 = vmul.f32 1.0, %v91
    %v93 = vmax.f32 %v92, 1e-12
    %v94 = vmin.f32 %v93, 1.0
    %v95 = vsub.f32 1.0, %v56
    %v96 = vmul.f32 %v75, %v95
    %v97 = vadd.f32 %v56, %v96
    %v99 = vsel %vm42, %v31, 0
    %101 = vmatprep.subr.mxu0 0.0
    %102 = vmatpush1.msra.mxu0 %v32
    %103 = vmatprep.subr.mxu0 0.0
    %104 = vmatpush1.msra.mxu0 %v33
    %105 = vmatprep.subr.mxu0 0.0
    %106 = vmatpush1.msra.mxu0 %v34
    %107 = vmatprep.subr.mxu0 0.0
    %108 = vmatpush1.msra.mxu0 %v35
    %109 = vmatprep.subr.mxu0 0.0
    %110 = vmatpush1.msra.mxu0 0.0
    %111 = vmatprep.subr.mxu0 0.0
    %112 = vmatpush1.msra.mxu0 0.0
    %113 = vmatprep.subr.mxu0 0.0
    %114 = vmatpush1.msra.mxu0 0.0
    %115 = vmatprep.subr.mxu0 0.0
    %116 = vmatpush1.msra.mxu0 0.0
    %117 = vmatprep.subr.mxu0 0.0
    %118 = vmatpush1.msra.mxu0 0.0
    %119 = vmatprep.subr.mxu0 0.0
    %120 = vmatpush1.msra.mxu0 0.0
    %121 = vmatprep.subr.mxu0 0.0
    %122 = vmatpush1.msra.mxu0 0.0
    %123 = vmatprep.subr.mxu0 0.0
    %124 = vmatpush1.msra.mxu0 0.0
    %125 = vmatprep.subr.mxu0 0.0
    %126 = vmatpush1.msra.mxu0 0.0
    %127 = vmatprep.subr.mxu0 0.0
    %128 = vmatpush1.msra.mxu0 0.0
    %129 = vmatprep.subr.mxu0 0.0
    %130 = vmatpush1.msra.mxu0 0.0
    %131 = vmatprep.subr.mxu0 0.0
    %132 = vmatpush1.msra.mxu0 0.0
    %133 = vmatprep.subr.mxu0 0.0
    %134 = vmatpush1.msra.mxu0 0.0
    %135 = vmatprep.subr.mxu0 0.0
    %136 = vmatpush1.msra.mxu0 0.0
    %137 = vmatprep.subr.mxu0 0.0
    %138 = vmatpush1.msra.mxu0 0.0
    %139 = vmatprep.subr.mxu0 0.0
    %140 = vmatpush1.msra.mxu0 0.0
    %141 = vmatprep.subr.mxu0 0.0
    %142 = vmatpush1.msra.mxu0 0.0
    %143 = vmatprep.subr.mxu0 0.0
    %144 = vmatpush1.msra.mxu0 0.0
    %145 = vmatprep.subr.mxu0 0.0
    %146 = vmatpush1.msra.mxu0 0.0
    %147 = vmatprep.subr.mxu0 0.0
    %148 = vmatpush1.msra.mxu0 0.0
    %149 = vmatprep.subr.mxu0 0.0
    %150 = vmatpush1.msra.mxu0 0.0
    %151 = vmatprep.subr.mxu0 0.0
    %152 = vmatpush1.msra.mxu0 0.0
    %153 = vmatprep.subr.mxu0 0.0
    %154 = vmatpush1.msra.mxu0 0.0
    %155 = vmatprep.subr.mxu0 0.0
    %156 = vmatpush1.msra.mxu0 0.0
    %157 = vmatprep.subr.mxu0 0.0
    %158 = vmatpush1.msra.mxu0 0.0
    %159 = vmatprep.subr.mxu0 0.0
    %160 = vmatpush1.msra.mxu0 0.0
    %161 = vmatprep.subr.mxu0 0.0
    %162 = vmatpush1.msra.mxu0 0.0
    %163 = vmatprep.subr.mxu0 0.0
    %164 = vmatpush1.msra.mxu0 0.0
    %165 = vmatprep.mubr.f32.mxu0 0.0
    %166 = vmatmul.mubr.f32.gmra.mrb[0].mxu0 %v99
    %v167 = vpop.f32.mrb[0].mxu0
    %v168 = vadd.f32 0.0, %v167
    %v169 = vpop.f32.mrb[0].mxu0
    %170 = vdwg.mxu0
    %v171 = vmul.f32 %v168, 0.03125
    %v172 = vlaneseq
    %v173 = vand.u32 %v172, 127
    %vm174 = vcmp.lt.s32.totalorder %v173, 8
    %v175 = vsel %vm174, 1, 0
    %vm176 = vcmp.eq.s32.totalorder %v175, 1
    %v177 = vsel %vm176, %v171, inf
    %178 = vmin.xlane.f32.xlu0 %v177
    %v179 = vpop.xlane.xlu0 %178
    %v180 = vsel %vm176, %v171, -inf
    %181 = vmax.xlane.f32.xlu0 %v180
    %v182 = vpop.xlane.xlu0 %181
    %v183 = vsub.f32 %v171, %v179
    %v184 = vsub.f32 %v182, %v179
    %v185 = vrcp.pop %v184
    %v186 = vmul.f32 1.0, %v185
    %v187 = vmul.f32 %v183, %v186
    %v188 = vsel %vm176, %v187, -inf
    %189 = vmax.xlane.f32.xlu0 %v188
    %v190 = vpop.xlane.xlu0 %189
    %v191 = vmin.f32 %v56, %v190
    %v192 = vsub.f32 %v191, 1e-12
    %v193 = vrcp.pop %v94
    %v194 = vmul.f32 1.0, %v193
    %v195 = vsub.f32 %v187, %v192
    %v196 = vand.u32 2147483647, %v195
    %v197 = vlog2.pop %v196
    %v198 = vmul.f32 %v197, 0.6931472
    %v199 = vmul.f32 %v194, %v198
    %v200 = vmax.f32 %v199, -27.631021
    %v201 = vsub.f32 %v97, %v187
    %v202 = vand.u32 2147483647, %v201
    %v203 = vlog2.pop %v202
    %v204 = vmul.f32 %v203, 0.6931472
    %v205 = vmul.f32 %v194, %v204
    %v206 = vmax.f32 %v205, -27.631021
    %v207 = vsub.f32 %v206, %v200
    %v208 = vmul.f32 %v207, 1.442695
    %v209 = vpow.pop %v208
    %v210 = vadd.f32 %v209, 1.0
    %v211 = vlog2.pop %v210
    %v212 = vmul.f32 %v211, 0.6931472
    %v213 = vsub.f32 0.0, %v212
    %vm214 = vcmp.lt.f32.partialorder %v187, %v192
    %v215 = vsel %vm214, -inf, %v213
    %vm216 = vcmp.gt.f32.partialorder %v187, %v97
    %v217 = vsel %vm216, 0.0, %v215
    %v218 = vadd.f32 %v171, %v217
    %219 = vst [vmem:[#allocation5] sm:$0xff] %v218
    // Predicated region
    $region22: #{_pointwise_soft_mask.1} parent=1 // pred_check
      _
    $region23: #{_pointwise_soft_mask.1} parent=1 // pred_check_branch
      %221 = sbr.rel (0) target = $region25
    $region24: #{_pointwise_soft_mask.1} parent=1 // pred_region
      %s223 = ssub.s32 128, 128
      %224 = vsyncadd [#allocation3], %s223
      %s226 = sshll.u32 [#allocation5], 4
      %s227 = int_to_ptr.vmem [resolvable:$true] %s226
      %229 = dma.vmem_to_hbm [thread:$0]  %s227, 128, %s4, [#allocation3]
    $region25: #{_pointwise_soft_mask.1} parent=1 // pred_fallthru
      _
    // Predicated region
    $region26: #{_pointwise_soft_mask.1} parent=1 // pred_check
      _
    $region27: #{_pointwise_soft_mask.1} parent=1 // pred_check_branch
      %231 = sbr.rel (0) target = $region29
    $region28: #{_pointwise_soft_mask.1} parent=1 // pred_region
      %232 = dma.done [#allocation3], 128
    $region29: #{_pointwise_soft_mask.1} parent=1 // pred_fallthru
      _
    %233 = vsyncpa [#allocation3], 1
    %234 = vsyncpa [#allocation4], 1

</llo_original>
